<compile_context>
chip_gen: v6e
topology: v6e:2x2x1
jax: 0.10.0
libtpu: 0.0.40
codegen_flags: <defaults>
</compile_context>

<pallas_src>
import jax
import jax.numpy as jnp
from jax.experimental import pallas as pl
from jax.experimental.pallas import tpu as pltpu


def _round_up(x, m):
    return ((x + m - 1) // m) * m


def _bilstm_kernel(len_ref, g_ref, whh_ref, out_ref, h_sc, c_sc):
    """Fused bidirectional LSTM recurrence.

    Grid: (direction d in {0: fwd, 1: bwd}, time-chunk i).
      len_ref : (B_pad, 1)            int32   sequence lengths
      g_ref   : (Tc, B_pad, 4*H_pad)  float32 precomputed x@W_ih + b (this dir)
      whh_ref : (H_pad, 4*H_pad)      bf16    recurrent weights (this dir)
      out_ref : (Tc, B_pad, H_pad)    float32 hidden states (this dir's lanes)
      h_sc/c_sc : (B_pad, H_pad)      float32 state carried across time chunks
    Gate order is PyTorch's (i, f, g, o); each gate owns H_pad aligned lanes.
    """
    d = pl.program_id(0)                # 0 = forward, 1 = backward
    i = pl.program_id(1)                # time-chunk index (in traversal order)
    n_tb = pl.num_programs(1)
    Tc = g_ref.shape[0]
    H_pad = out_ref.shape[-1]

    @pl.when(i == 0)
    def _():
        h_sc[...] = jnp.zeros_like(h_sc)
        c_sc[...] = jnp.zeros_like(c_sc)

    # Global start time of the chunk this grid step works on.
    base_t = ((1 - d) * i + d * (n_tb - 1 - i)) * Tc
    whh = whh_ref[...]                  # (H_pad, 4*H_pad) bf16, hoisted
    lens = len_ref[...]                 # (B_pad, 1) int32

    def step(local, carry):
        h, c = carry                                       # f32 (B_pad, H_pad)
        lt = jnp.where(d == 0, local, Tc - 1 - local)      # in-chunk position
        t = base_t + lt                                    # global timestep
        gates = g_ref[lt] + jnp.dot(h.astype(jnp.bfloat16), whh,
                                    preferred_element_type=jnp.float32)
        i_g = jax.nn.sigmoid(gates[:, 0 * H_pad:1 * H_pad])
        f_g = jax.nn.sigmoid(gates[:, 1 * H_pad:2 * H_pad])
        g_g = jnp.tanh(gates[:, 2 * H_pad:3 * H_pad])
        o_g = jax.nn.sigmoid(gates[:, 3 * H_pad:4 * H_pad])
        c_new = f_g * c + i_g * g_g
        h_new = o_g * jnp.tanh(c_new)
        # pack_padded_sequence: t >= length -> frozen state, zero output.
        mask = t < lens                                    # (B_pad, 1) bool
        out_ref[lt] = jnp.where(mask, h_new, 0.0).astype(out_ref.dtype)
        return jnp.where(mask, h_new, h), jnp.where(mask, c_new, c)

    h_fin, c_fin = jax.lax.fori_loop(0, Tc, step, (h_sc[...], c_sc[...]),
                                     unroll=True)
    h_sc[...] = h_fin
    c_sc[...] = c_fin


def bilstm(x_tbd, lengths, params, *, chunk=8):
    """One bidirectional LSTM layer.  x_tbd: (T, B, Din) f32 -> (T, B, 2H)."""
    T, B, Din = x_tbd.shape
    w_ih, w_hh, b = params["w_ih"], params["w_hh"], params["b"]
    H = w_hh.shape[1]

    B_pad = _round_up(max(B, 8), 8)          # sublane multiple
    H_pad = _round_up(max(H, 128), 128)      # 128-lane aligned per gate
    Tc = chunk
    T_pad = _round_up(T, Tc)
    n_tb = T_pad // Tc

    # --- hoisted input projection: one big bf16 GEMM over all timesteps ----
    g = jnp.einsum("tbd,zdg->tbzg",
                   x_tbd.astype(jnp.bfloat16), w_ih.astype(jnp.bfloat16),
                   preferred_element_type=jnp.float32)       # (T, B, 2, 4H)
    g = g + b[None, None, :, :].astype(jnp.float32)
    # Re-lay out: pad each gate to H_pad lanes, pad B/T, direction-major lanes.
    g = g.reshape(T, B, 2, 4, H)
    g = jnp.pad(g, ((0, T_pad - T), (0, B_pad - B), (0, 0), (0, 0),
                    (0, H_pad - H)))
    g = g.reshape(T_pad, B_pad, 2 * 4 * H_pad)               # (T_pad,B_pad,8Hp)

    whh = w_hh.reshape(2, H, 4, H)
    whh = jnp.pad(whh, ((0, 0), (0, H_pad - H), (0, 0), (0, H_pad - H)))
    whh = jnp.transpose(whh, (1, 0, 2, 3)).reshape(H_pad, 2 * 4 * H_pad)
    whh = whh.astype(jnp.bfloat16)                           # (H_pad, 8*H_pad)

    lens = jnp.pad(lengths.astype(jnp.int32), (0, B_pad - B)).reshape(B_pad, 1)

    def t_map(di, ti):
        # forward walks chunks 0..n_tb-1, backward walks them in reverse.
        return ((1 - di) * ti + di * (n_tb - 1 - ti), 0, di)

    out = pl.pallas_call(
        _bilstm_kernel,
        out_shape=jax.ShapeDtypeStruct((T_pad, B_pad, 2 * H_pad), jnp.float32),
        grid_spec=pltpu.PrefetchScalarGridSpec(
            num_scalar_prefetch=0,
            grid=(2, n_tb),
            in_specs=[
                pl.BlockSpec((B_pad, 1), lambda di, ti: (0, 0)),
                pl.BlockSpec((Tc, B_pad, 4 * H_pad), t_map),
                pl.BlockSpec((H_pad, 4 * H_pad), lambda di, ti: (0, di)),
            ],
            out_specs=pl.BlockSpec((Tc, B_pad, H_pad), t_map),
            scratch_shapes=[pltpu.VMEM((B_pad, H_pad), jnp.float32),
                            pltpu.VMEM((B_pad, H_pad), jnp.float32)],
        ),
        compiler_params=pltpu.CompilerParams(
            dimension_semantics=("parallel", "arbitrary")),
    )(lens, g, whh)

    fwd = out[:T, :B, :H]
    bwd = out[:T, :B, H_pad:H_pad + H]
    return jnp.concatenate([fwd, bwd], axis=-1)              # (T, B, 2H)


def init_bilstm_params(key, d_in, hidden):
    """Deterministic stand-in for the CoVe checkpoint (PyTorch LSTM shapes).

    Returns direction-stacked, pre-transposed parameters:
      w_ih: (2, d_in, 4H)   w_hh: (2, H, 4H)   b: (2, 4H) = b_ih + b_hh
    """
    # TODO(synk): the real module torch.load()s frozen CoVe weights; random
    # init with identical shapes / gate order stands in for that file.
    k = 1.0 / jnp.sqrt(hidden)

    def u(kk, shape):
        return jax.random.uniform(kk, shape, jnp.float32, -k, k)

    def one_dir(kk):
        k1, k2, k3, k4 = jax.random.split(kk, 4)
        w_ih = u(k1, (4 * hidden, d_in))        # PyTorch weight_ih_l0
        w_hh = u(k2, (4 * hidden, hidden))      # PyTorch weight_hh_l0
        b_ih = u(k3, (4 * hidden,))
        b_hh = u(k4, (4 * hidden,))
        return w_ih.T, w_hh.T, b_ih + b_hh

    kf, kb = jax.random.split(key, 2)
    wif, whf, bf = one_dir(kf)
    wib, whb, bb = one_dir(kb)
    return {"w_ih": jnp.stack([wif, wib]),
            "w_hh": jnp.stack([whf, whb]),
            "b": jnp.stack([bf, bb])}


def mt_lstm_forward(x_ids, lengths, word_vectors, params1, params2):
    """Embed -> biLSTM1 -> biLSTM2; returns full-T, batch-first outputs."""
    emb = jnp.take(word_vectors, x_ids, axis=0)                 # (B, T, glove)
    x_tbd = jnp.transpose(emb, (1, 0, 2)).astype(jnp.float32)   # (T, B, glove)
    out1 = bilstm(x_tbd, lengths, params1)                      # (T, B, cove)
    out2 = bilstm(out1, lengths, params2)                       # (T, B, cove)
    return (jnp.transpose(out1, (1, 0, 2)),
            jnp.transpose(out2, (1, 0, 2)))                     # (B, T, cove)


if __name__ == "__main__":
    glove_dim = 32
    cove_dim = 2 * glove_dim      # rnn2 input = bidirectional rnn1 output
    vocab = 50
    B, T = 2, 8

    root = jax.random.PRNGKey(0)
    k_wv, k_p1, k_p2, k_x = jax.random.split(root, 4)

    word_vectors = jax.random.normal(k_wv, (vocab, glove_dim), jnp.float32)
    params1 = init_bilstm_params(k_p1, glove_dim, glove_dim)    # rnn1
    params2 = init_bilstm_params(k_p2, cove_dim, glove_dim)     # rnn2

    x_ids = jax.random.randint(k_x, (B, T), 0, vocab, jnp.int32)
    lengths = jnp.array([T, 5], dtype=jnp.int32)                # lengths <= T

    fwd_fn = jax.jit(mt_lstm_forward)
    out1_full, out2_full = fwd_fn(x_ids, lengths, word_vectors,
                                  params1, params2)
    jax.block_until_ready((out1_full, out2_full))

    # pad_packed_sequence(batch_first=True) pads only up to max(lengths);
    # slice on the host AFTER the jitted compute has been dispatched.
    max_len = int(jax.device_get(jnp.max(lengths)))
    out1 = out1_full[:, :max_len]
    out2 = out2_full[:, :max_len]
    assert out1.shape == (B, max_len, cove_dim), out1.shape
    assert out2.shape == (B, max_len, cove_dim), out2.shape
    print("KERNEL_OK")
</pallas_src>

<mosaic_0001>
module attributes {stable_mosaic.version = 11 : i64} {
  func.func @_bilstm_kernel(%arg0: i32, %arg1: i32, %arg2: memref<8x1xi32, #tpu.memory_space<vmem>>, %arg3: memref<8x8x512xf32, #tpu.memory_space<vmem>>, %arg4: memref<128x512xbf16, #tpu.memory_space<vmem>>, %arg5: memref<8x8x128xf32, #tpu.memory_space<vmem>>, %arg6: memref<8x128xf32, #tpu.memory_space<vmem>>, %arg7: memref<8x128xf32, #tpu.memory_space<vmem>>) attributes {dimension_semantics = [#tpu.dimension_semantics<parallel>, #tpu.dimension_semantics<arbitrary>], iteration_bounds = array<i64: 2, 1>, scalar_prefetch = 0 : i64, scratch_operands = 2 : i64, tpu.core_type = #tpu.core_type<tc>, window_params = [{pipeline_mode = #tpu.pipeline_mode<synchronous>, transform_indices = @transform_0, window_bounds = array<i64: 8, 1>}, {transform_indices = @transform_1, window_bounds = array<i64: 8, 8, 512>}, {transform_indices = @transform_2, window_bounds = array<i64: 128, 512>}, {transform_indices = @transform_3, window_bounds = array<i64: 8, 8, 128>}]} {
    %c0_i32 = arith.constant 0 : i32
    %0 = arith.cmpi eq, %arg1, %c0_i32 : i32
    %1 = arith.extui %0 : i1 to i32
    %c0_i32_0 = arith.constant 0 : i32
    %2 = arith.cmpi ne, %1, %c0_i32_0 : i32
    scf.if %2 {
      %cst_103 = arith.constant 0.000000e+00 : f32
      %423 = vector.broadcast %cst_103 : f32 to vector<8x128xf32>
      %c0_104 = arith.constant 0 : index
      %c0_105 = arith.constant 0 : index
      %424 = vector.load %arg6[%c0_104, %c0_105] : memref<8x128xf32, #tpu.memory_space<vmem>>, vector<8x128xf32>
      tpu.vector_store %arg6[%c0_104, %c0_105], %423 {strides = array<i32>} : memref<8x128xf32, #tpu.memory_space<vmem>>, vector<8x128xf32>,
      %cst_106 = arith.constant 0.000000e+00 : f32
      %425 = vector.broadcast %cst_106 : f32 to vector<8x128xf32>
      %c0_107 = arith.constant 0 : index
      %c0_108 = arith.constant 0 : index
      %426 = vector.load %arg7[%c0_107, %c0_108] : memref<8x128xf32, #tpu.memory_space<vmem>>, vector<8x128xf32>
      tpu.vector_store %arg7[%c0_107, %c0_108], %425 {strides = array<i32>} : memref<8x128xf32, #tpu.memory_space<vmem>>, vector<8x128xf32>,
    } else {
    }
    %c1_i32 = arith.constant 1 : i32
    %3 = arith.subi %c1_i32, %arg0 : i32
    %4 = arith.muli %3, %arg1 : i32
    %c0_i32_1 = arith.constant 0 : i32
    %5 = arith.subi %c0_i32_1, %arg1 : i32
    %6 = arith.muli %arg0, %5 : i32
    %7 = arith.addi %4, %6 : i32
    %c8_i32 = arith.constant 8 : i32
    %8 = arith.muli %7, %c8_i32 : i32
    %c0 = arith.constant 0 : index
    %c0_2 = arith.constant 0 : index
    %9 = vector.load %arg4[%c0, %c0_2] : memref<128x512xbf16, #tpu.memory_space<vmem>>, vector<128x512xbf16>
    %c0_3 = arith.constant 0 : index
    %c0_4 = arith.constant 0 : index
    %10 = vector.load %arg2[%c0_3, %c0_4] : memref<8x1xi32, #tpu.memory_space<vmem>>, vector<8x1xi32>
    %c0_5 = arith.constant 0 : index
    %c0_6 = arith.constant 0 : index
    %11 = vector.load %arg6[%c0_5, %c0_6] : memref<8x128xf32, #tpu.memory_space<vmem>>, vector<8x128xf32>
    %c0_7 = arith.constant 0 : index
    %c0_8 = arith.constant 0 : index
    %12 = vector.load %arg7[%c0_7, %c0_8] : memref<8x128xf32, #tpu.memory_space<vmem>>, vector<8x128xf32>
    %c0_i32_9 = arith.constant 0 : i32
    %c0_i32_10 = arith.constant 0 : i32
    %13 = arith.cmpi eq, %arg0, %c0_i32_10 : i32
    %c7_i32 = arith.constant 7 : i32
    %14 = arith.subi %c7_i32, %c0_i32_9 : i32
    %15 = arith.select %13, %c0_i32_9, %14 : i32
    %16 = arith.addi %8, %15 : i32
    %17 = arith.index_cast %15 : i32 to index
    %c0_11 = arith.constant 0 : index
    %c0_12 = arith.constant 0 : index
    %18 = vector.load %arg3[%17, %c0_11, %c0_12] : memref<8x8x512xf32, #tpu.memory_space<vmem>>, vector<1x8x512xf32>
    %19 = vector.shape_cast %18 : vector<1x8x512xf32> to vector<8x512xf32>
    %20 = arith.truncf %11 : vector<8x128xf32> to vector<8x128xbf16>
    %cst = arith.constant dense<0.000000e+00> : vector<8x512xf32>
    %21 = tpu.matmul %20, %9, %cst {dimension_numbers = #tpu.dot_dimension_numbers<[1], [0], [0], [1], [0, 0, 1, 1], [], []>} : vector<8x128xbf16>, vector<128x512xbf16>, vector<8x512xf32> -> vector<8x512xf32>
    %22 = arith.addf %19, %21 : vector<8x512xf32>
    %23 = vector.extract_strided_slice %22 {offsets = [0, 0], sizes = [8, 128], strides = [1, 1]} : vector<8x512xf32> to vector<8x128xf32>
    %24 = arith.negf %23 : vector<8x128xf32>
    %25 = math.exp %24 : vector<8x128xf32>
    %cst_13 = arith.constant 1.000000e+00 : f32
    %26 = vector.broadcast %cst_13 : f32 to vector<8x128xf32>
    %27 = arith.addf %26, %25 : vector<8x128xf32>
    %28 = arith.divf %26, %27 : vector<8x128xf32>
    %29 = vector.extract_strided_slice %22 {offsets = [0, 128], sizes = [8, 128], strides = [1, 1]} : vector<8x512xf32> to vector<8x128xf32>
    %30 = arith.negf %29 : vector<8x128xf32>
    %31 = math.exp %30 : vector<8x128xf32>
    %cst_14 = arith.constant 1.000000e+00 : f32
    %32 = vector.broadcast %cst_14 : f32 to vector<8x128xf32>
    %33 = arith.addf %32, %31 : vector<8x128xf32>
    %34 = arith.divf %32, %33 : vector<8x128xf32>
    %35 = vector.extract_strided_slice %22 {offsets = [0, 256], sizes = [8, 128], strides = [1, 1]} : vector<8x512xf32> to vector<8x128xf32>
    %36 = math.tanh %35 : vector<8x128xf32>
    %37 = vector.extract_strided_slice %22 {offsets = [0, 384], sizes = [8, 128], strides = [1, 1]} : vector<8x512xf32> to vector<8x128xf32>
    %38 = arith.negf %37 : vector<8x128xf32>
    %39 = math.exp %38 : vector<8x128xf32>
    %cst_15 = arith.constant 1.000000e+00 : f32
    %40 = vector.broadcast %cst_15 : f32 to vector<8x128xf32>
    %41 = arith.addf %40, %39 : vector<8x128xf32>
    %42 = arith.divf %40, %41 : vector<8x128xf32>
    %43 = arith.mulf %34, %12 : vector<8x128xf32>
    %44 = arith.mulf %28, %36 : vector<8x128xf32>
    %45 = arith.addf %43, %44 : vector<8x128xf32>
    %46 = math.tanh %45 : vector<8x128xf32>
    %47 = arith.mulf %42, %46 : vector<8x128xf32>
    %48 = vector.broadcast %16 : i32 to vector<8x1xi32>
    %49 = arith.cmpi slt, %48, %10 : vector<8x1xi32>
    %cst_16 = arith.constant 0.000000e+00 : f32
    %50 = vector.shape_cast %49 : vector<8x1xi1> to vector<8x1xi1>
    %51 = vector.broadcast %50 : vector<8x1xi1> to vector<8x128xi1>
    %52 = vector.broadcast %cst_16 : f32 to vector<8x128xf32>
    %53 = arith.select %51, %47, %52 : vector<8x128xi1>, vector<8x128xf32>
    %54 = arith.index_cast %15 : i32 to index
    %c0_17 = arith.constant 0 : index
    %c0_18 = arith.constant 0 : index
    %55 = vector.load %arg5[%54, %c0_17, %c0_18] : memref<8x8x128xf32, #tpu.memory_space<vmem>>, vector<1x8x128xf32>
    %56 = vector.shape_cast %55 : vector<1x8x128xf32> to vector<8x128xf32>
    %57 = vector.shape_cast %53 : vector<8x128xf32> to vector<1x8x128xf32>
    tpu.vector_store %arg5[%54, %c0_17, %c0_18], %57 {strides = array<i32>} : memref<8x8x128xf32, #tpu.memory_space<vmem>>, vector<1x8x128xf32>,
    %58 = vector.shape_cast %49 : vector<8x1xi1> to vector<8x1xi1>
    %59 = vector.broadcast %58 : vector<8x1xi1> to vector<8x128xi1>
    %60 = arith.select %59, %47, %11 : vector<8x128xi1>, vector<8x128xf32>
    %61 = vector.shape_cast %49 : vector<8x1xi1> to vector<8x1xi1>
    %62 = vector.broadcast %61 : vector<8x1xi1> to vector<8x128xi1>
    %63 = arith.select %62, %45, %12 : vector<8x128xi1>, vector<8x128xf32>
    %c1_i32_19 = arith.constant 1 : i32
    %c0_i32_20 = arith.constant 0 : i32
    %64 = arith.cmpi eq, %arg0, %c0_i32_20 : i32
    %c7_i32_21 = arith.constant 7 : i32
    %65 = arith.subi %c7_i32_21, %c1_i32_19 : i32
    %66 = arith.select %64, %c1_i32_19, %65 : i32
    %67 = arith.addi %8, %66 : i32
    %68 = arith.index_cast %66 : i32 to index
    %c0_22 = arith.constant 0 : index
    %c0_23 = arith.constant 0 : index
    %69 = vector.load %arg3[%68, %c0_22, %c0_23] : memref<8x8x512xf32, #tpu.memory_space<vmem>>, vector<1x8x512xf32>
    %70 = vector.shape_cast %69 : vector<1x8x512xf32> to vector<8x512xf32>
    %71 = arith.truncf %60 : vector<8x128xf32> to vector<8x128xbf16>
    %cst_24 = arith.constant dense<0.000000e+00> : vector<8x512xf32>
    %72 = tpu.matmul %71, %9, %cst_24 {dimension_numbers = #tpu.dot_dimension_numbers<[1], [0], [0], [1], [0, 0, 1, 1], [], []>} : vector<8x128xbf16>, vector<128x512xbf16>, vector<8x512xf32> -> vector<8x512xf32>
    %73 = arith.addf %70, %72 : vector<8x512xf32>
    %74 = vector.extract_strided_slice %73 {offsets = [0, 0], sizes = [8, 128], strides = [1, 1]} : vector<8x512xf32> to vector<8x128xf32>
    %75 = arith.negf %74 : vector<8x128xf32>
    %76 = math.exp %75 : vector<8x128xf32>
    %cst_25 = arith.constant 1.000000e+00 : f32
    %77 = vector.broadcast %cst_25 : f32 to vector<8x128xf32>
    %78 = arith.addf %77, %76 : vector<8x128xf32>
    %79 = arith.divf %77, %78 : vector<8x128xf32>
    %80 = vector.extract_strided_slice %73 {offsets = [0, 128], sizes = [8, 128], strides = [1, 1]} : vector<8x512xf32> to vector<8x128xf32>
    %81 = arith.negf %80 : vector<8x128xf32>
    %82 = math.exp %81 : vector<8x128xf32>
    %cst_26 = arith.constant 1.000000e+00 : f32
    %83 = vector.broadcast %cst_26 : f32 to vector<8x128xf32>
    %84 = arith.addf %83, %82 : vector<8x128xf32>
    %85 = arith.divf %83, %84 : vector<8x128xf32>
    %86 = vector.extract_strided_slice %73 {offsets = [0, 256], sizes = [8, 128], strides = [1, 1]} : vector<8x512xf32> to vector<8x128xf32>
    %87 = math.tanh %86 : vector<8x128xf32>
    %88 = vector.extract_strided_slice %73 {offsets = [0, 384], sizes = [8, 128], strides = [1, 1]} : vector<8x512xf32> to vector<8x128xf32>
    %89 = arith.negf %88 : vector<8x128xf32>
    %90 = math.exp %89 : vector<8x128xf32>
    %cst_27 = arith.constant 1.000000e+00 : f32
    %91 = vector.broadcast %cst_27 : f32 to vector<8x128xf32>
    %92 = arith.addf %91, %90 : vector<8x128xf32>
    %93 = arith.divf %91, %92 : vector<8x128xf32>
    %94 = arith.mulf %85, %63 : vector<8x128xf32>
    %95 = arith.mulf %79, %87 : vector<8x128xf32>
    %96 = arith.addf %94, %95 : vector<8x128xf32>
    %97 = math.tanh %96 : vector<8x128xf32>
    %98 = arith.mulf %93, %97 : vector<8x128xf32>
    %99 = vector.broadcast %67 : i32 to vector<8x1xi32>
    %100 = arith.cmpi slt, %99, %10 : vector<8x1xi32>
    %cst_28 = arith.constant 0.000000e+00 : f32
    %101 = vector.shape_cast %100 : vector<8x1xi1> to vector<8x1xi1>
    %102 = vector.broadcast %101 : vector<8x1xi1> to vector<8x128xi1>
    %103 = vector.broadcast %cst_28 : f32 to vector<8x128xf32>
    %104 = arith.select %102, %98, %103 : vector<8x128xi1>, vector<8x128xf32>
    %105 = arith.index_cast %66 : i32 to index
    %c0_29 = arith.constant 0 : index
    %c0_30 = arith.constant 0 : index
    %106 = vector.load %arg5[%105, %c0_29, %c0_30] : memref<8x8x128xf32, #tpu.memory_space<vmem>>, vector<1x8x128xf32>
    %107 = vector.shape_cast %106 : vector<1x8x128xf32> to vector<8x128xf32>
    %108 = vector.shape_cast %104 : vector<8x128xf32> to vector<1x8x128xf32>
    tpu.vector_store %arg5[%105, %c0_29, %c0_30], %108 {strides = array<i32>} : memref<8x8x128xf32, #tpu.memory_space<vmem>>, vector<1x8x128xf32>,
    %109 = vector.shape_cast %100 : vector<8x1xi1> to vector<8x1xi1>
    %110 = vector.broadcast %109 : vector<8x1xi1> to vector<8x128xi1>
    %111 = arith.select %110, %98, %60 : vector<8x128xi1>, vector<8x128xf32>
    %112 = vector.shape_cast %100 : vector<8x1xi1> to vector<8x1xi1>
    %113 = vector.broadcast %112 : vector<8x1xi1> to vector<8x128xi1>
    %114 = arith.select %113, %96, %63 : vector<8x128xi1>, vector<8x128xf32>
    %c2_i32 = arith.constant 2 : i32
    %c0_i32_31 = arith.constant 0 : i32
    %115 = arith.cmpi eq, %arg0, %c0_i32_31 : i32
    %c7_i32_32 = arith.constant 7 : i32
    %116 = arith.subi %c7_i32_32, %c2_i32 : i32
    %117 = arith.select %115, %c2_i32, %116 : i32
    %118 = arith.addi %8, %117 : i32
    %119 = arith.index_cast %117 : i32 to index
    %c0_33 = arith.constant 0 : index
    %c0_34 = arith.constant 0 : index
    %120 = vector.load %arg3[%119, %c0_33, %c0_34] : memref<8x8x512xf32, #tpu.memory_space<vmem>>, vector<1x8x512xf32>
    %121 = vector.shape_cast %120 : vector<1x8x512xf32> to vector<8x512xf32>
    %122 = arith.truncf %111 : vector<8x128xf32> to vector<8x128xbf16>
    %cst_35 = arith.constant dense<0.000000e+00> : vector<8x512xf32>
    %123 = tpu.matmul %122, %9, %cst_35 {dimension_numbers = #tpu.dot_dimension_numbers<[1], [0], [0], [1], [0, 0, 1, 1], [], []>} : vector<8x128xbf16>, vector<128x512xbf16>, vector<8x512xf32> -> vector<8x512xf32>
    %124 = arith.addf %121, %123 : vector<8x512xf32>
    %125 = vector.extract_strided_slice %124 {offsets = [0, 0], sizes = [8, 128], strides = [1, 1]} : vector<8x512xf32> to vector<8x128xf32>
    %126 = arith.negf %125 : vector<8x128xf32>
    %127 = math.exp %126 : vector<8x128xf32>
    %cst_36 = arith.constant 1.000000e+00 : f32
    %128 = vector.broadcast %cst_36 : f32 to vector<8x128xf32>
    %129 = arith.addf %128, %127 : vector<8x128xf32>
    %130 = arith.divf %128, %129 : vector<8x128xf32>
    %131 = vector.extract_strided_slice %124 {offsets = [0, 128], sizes = [8, 128], strides = [1, 1]} : vector<8x512xf32> to vector<8x128xf32>
    %132 = arith.negf %131 : vector<8x128xf32>
    %133 = math.exp %132 : vector<8x128xf32>
    %cst_37 = arith.constant 1.000000e+00 : f32
    %134 = vector.broadcast %cst_37 : f32 to vector<8x128xf32>
    %135 = arith.addf %134, %133 : vector<8x128xf32>
    %136 = arith.divf %134, %135 : vector<8x128xf32>
    %137 = vector.extract_strided_slice %124 {offsets = [0, 256], sizes = [8, 128], strides = [1, 1]} : vector<8x512xf32> to vector<8x128xf32>
    %138 = math.tanh %137 : vector<8x128xf32>
    %139 = vector.extract_strided_slice %124 {offsets = [0, 384], sizes = [8, 128], strides = [1, 1]} : vector<8x512xf32> to vector<8x128xf32>
    %140 = arith.negf %139 : vector<8x128xf32>
    %141 = math.exp %140 : vector<8x128xf32>
    %cst_38 = arith.constant 1.000000e+00 : f32
    %142 = vector.broadcast %cst_38 : f32 to vector<8x128xf32>
    %143 = arith.addf %142, %141 : vector<8x128xf32>
    %144 = arith.divf %142, %143 : vector<8x128xf32>
    %145 = arith.mulf %136, %114 : vector<8x128xf32>
    %146 = arith.mulf %130, %138 : vector<8x128xf32>
    %147 = arith.addf %145, %146 : vector<8x128xf32>
    %148 = math.tanh %147 : vector<8x128xf32>
    %149 = arith.mulf %144, %148 : vector<8x128xf32>
    %150 = vector.broadcast %118 : i32 to vector<8x1xi32>
    %151 = arith.cmpi slt, %150, %10 : vector<8x1xi32>
    %cst_39 = arith.constant 0.000000e+00 : f32
    %152 = vector.shape_cast %151 : vector<8x1xi1> to vector<8x1xi1>
    %153 = vector.broadcast %152 : vector<8x1xi1> to vector<8x128xi1>
    %154 = vector.broadcast %cst_39 : f32 to vector<8x128xf32>
    %155 = arith.select %153, %149, %154 : vector<8x128xi1>, vector<8x128xf32>
    %156 = arith.index_cast %117 : i32 to index
    %c0_40 = arith.constant 0 : index
    %c0_41 = arith.constant 0 : index
    %157 = vector.load %arg5[%156, %c0_40, %c0_41] : memref<8x8x128xf32, #tpu.memory_space<vmem>>, vector<1x8x128xf32>
    %158 = vector.shape_cast %157 : vector<1x8x128xf32> to vector<8x128xf32>
    %159 = vector.shape_cast %155 : vector<8x128xf32> to vector<1x8x128xf32>
    tpu.vector_store %arg5[%156, %c0_40, %c0_41], %159 {strides = array<i32>} : memref<8x8x128xf32, #tpu.memory_space<vmem>>, vector<1x8x128xf32>,
    %160 = vector.shape_cast %151 : vector<8x1xi1> to vector<8x1xi1>
    %161 = vector.broadcast %160 : vector<8x1xi1> to vector<8x128xi1>
    %162 = arith.select %161, %149, %111 : vector<8x128xi1>, vector<8x128xf32>
    %163 = vector.shape_cast %151 : vector<8x1xi1> to vector<8x1xi1>
    %164 = vector.broadcast %163 : vector<8x1xi1> to vector<8x128xi1>
    %165 = arith.select %164, %147, %114 : vector<8x128xi1>, vector<8x128xf32>
    %c3_i32 = arith.constant 3 : i32
    %c0_i32_42 = arith.constant 0 : i32
    %166 = arith.cmpi eq, %arg0, %c0_i32_42 : i32
    %c7_i32_43 = arith.constant 7 : i32
    %167 = arith.subi %c7_i32_43, %c3_i32 : i32
    %168 = arith.select %166, %c3_i32, %167 : i32
    %169 = arith.addi %8, %168 : i32
    %170 = arith.index_cast %168 : i32 to index
    %c0_44 = arith.constant 0 : index
    %c0_45 = arith.constant 0 : index
    %171 = vector.load %arg3[%170, %c0_44, %c0_45] : memref<8x8x512xf32, #tpu.memory_space<vmem>>, vector<1x8x512xf32>
    %172 = vector.shape_cast %171 : vector<1x8x512xf32> to vector<8x512xf32>
    %173 = arith.truncf %162 : vector<8x128xf32> to vector<8x128xbf16>
    %cst_46 = arith.constant dense<0.000000e+00> : vector<8x512xf32>
    %174 = tpu.matmul %173, %9, %cst_46 {dimension_numbers = #tpu.dot_dimension_numbers<[1], [0], [0], [1], [0, 0, 1, 1], [], []>} : vector<8x128xbf16>, vector<128x512xbf16>, vector<8x512xf32> -> vector<8x512xf32>
    %175 = arith.addf %172, %174 : vector<8x512xf32>
    %176 = vector.extract_strided_slice %175 {offsets = [0, 0], sizes = [8, 128], strides = [1, 1]} : vector<8x512xf32> to vector<8x128xf32>
    %177 = arith.negf %176 : vector<8x128xf32>
    %178 = math.exp %177 : vector<8x128xf32>
    %cst_47 = arith.constant 1.000000e+00 : f32
    %179 = vector.broadcast %cst_47 : f32 to vector<8x128xf32>
    %180 = arith.addf %179, %178 : vector<8x128xf32>
    %181 = arith.divf %179, %180 : vector<8x128xf32>
    %182 = vector.extract_strided_slice %175 {offsets = [0, 128], sizes = [8, 128], strides = [1, 1]} : vector<8x512xf32> to vector<8x128xf32>
    %183 = arith.negf %182 : vector<8x128xf32>
    %184 = math.exp %183 : vector<8x128xf32>
    %cst_48 = arith.constant 1.000000e+00 : f32
    %185 = vector.broadcast %cst_48 : f32 to vector<8x128xf32>
    %186 = arith.addf %185, %184 : vector<8x128xf32>
    %187 = arith.divf %185, %186 : vector<8x128xf32>
    %188 = vector.extract_strided_slice %175 {offsets = [0, 256], sizes = [8, 128], strides = [1, 1]} : vector<8x512xf32> to vector<8x128xf32>
    %189 = math.tanh %188 : vector<8x128xf32>
    %190 = vector.extract_strided_slice %175 {offsets = [0, 384], sizes = [8, 128], strides = [1, 1]} : vector<8x512xf32> to vector<8x128xf32>
    %191 = arith.negf %190 : vector<8x128xf32>
    %192 = math.exp %191 : vector<8x128xf32>
    %cst_49 = arith.constant 1.000000e+00 : f32
    %193 = vector.broadcast %cst_49 : f32 to vector<8x128xf32>
    %194 = arith.addf %193, %192 : vector<8x128xf32>
    %195 = arith.divf %193, %194 : vector<8x128xf32>
    %196 = arith.mulf %187, %165 : vector<8x128xf32>
    %197 = arith.mulf %181, %189 : vector<8x128xf32>
    %198 = arith.addf %196, %197 : vector<8x128xf32>
    %199 = math.tanh %198 : vector<8x128xf32>
    %200 = arith.mulf %195, %199 : vector<8x128xf32>
    %201 = vector.broadcast %169 : i32 to vector<8x1xi32>
    %202 = arith.cmpi slt, %201, %10 : vector<8x1xi32>
    %cst_50 = arith.constant 0.000000e+00 : f32
    %203 = vector.shape_cast %202 : vector<8x1xi1> to vector<8x1xi1>
    %204 = vector.broadcast %203 : vector<8x1xi1> to vector<8x128xi1>
    %205 = vector.broadcast %cst_50 : f32 to vector<8x128xf32>
    %206 = arith.select %204, %200, %205 : vector<8x128xi1>, vector<8x128xf32>
    %207 = arith.index_cast %168 : i32 to index
    %c0_51 = arith.constant 0 : index
    %c0_52 = arith.constant 0 : index
    %208 = vector.load %arg5[%207, %c0_51, %c0_52] : memref<8x8x128xf32, #tpu.memory_space<vmem>>, vector<1x8x128xf32>
    %209 = vector.shape_cast %208 : vector<1x8x128xf32> to vector<8x128xf32>
    %210 = vector.shape_cast %206 : vector<8x128xf32> to vector<1x8x128xf32>
    tpu.vector_store %arg5[%207, %c0_51, %c0_52], %210 {strides = array<i32>} : memref<8x8x128xf32, #tpu.memory_space<vmem>>, vector<1x8x128xf32>,
    %211 = vector.shape_cast %202 : vector<8x1xi1> to vector<8x1xi1>
    %212 = vector.broadcast %211 : vector<8x1xi1> to vector<8x128xi1>
    %213 = arith.select %212, %200, %162 : vector<8x128xi1>, vector<8x128xf32>
    %214 = vector.shape_cast %202 : vector<8x1xi1> to vector<8x1xi1>
    %215 = vector.broadcast %214 : vector<8x1xi1> to vector<8x128xi1>
    %216 = arith.select %215, %198, %165 : vector<8x128xi1>, vector<8x128xf32>
    %c4_i32 = arith.constant 4 : i32
    %c0_i32_53 = arith.constant 0 : i32
    %217 = arith.cmpi eq, %arg0, %c0_i32_53 : i32
    %c7_i32_54 = arith.constant 7 : i32
    %218 = arith.subi %c7_i32_54, %c4_i32 : i32
    %219 = arith.select %217, %c4_i32, %218 : i32
    %220 = arith.addi %8, %219 : i32
    %221 = arith.index_cast %219 : i32 to index
    %c0_55 = arith.constant 0 : index
    %c0_56 = arith.constant 0 : index
    %222 = vector.load %arg3[%221, %c0_55, %c0_56] : memref<8x8x512xf32, #tpu.memory_space<vmem>>, vector<1x8x512xf32>
    %223 = vector.shape_cast %222 : vector<1x8x512xf32> to vector<8x512xf32>
    %224 = arith.truncf %213 : vector<8x128xf32> to vector<8x128xbf16>
    %cst_57 = arith.constant dense<0.000000e+00> : vector<8x512xf32>
    %225 = tpu.matmul %224, %9, %cst_57 {dimension_numbers = #tpu.dot_dimension_numbers<[1], [0], [0], [1], [0, 0, 1, 1], [], []>} : vector<8x128xbf16>, vector<128x512xbf16>, vector<8x512xf32> -> vector<8x512xf32>
    %226 = arith.addf %223, %225 : vector<8x512xf32>
    %227 = vector.extract_strided_slice %226 {offsets = [0, 0], sizes = [8, 128], strides = [1, 1]} : vector<8x512xf32> to vector<8x128xf32>
    %228 = arith.negf %227 : vector<8x128xf32>
    %229 = math.exp %228 : vector<8x128xf32>
    %cst_58 = arith.constant 1.000000e+00 : f32
    %230 = vector.broadcast %cst_58 : f32 to vector<8x128xf32>
    %231 = arith.addf %230, %229 : vector<8x128xf32>
    %232 = arith.divf %230, %231 : vector<8x128xf32>
    %233 = vector.extract_strided_slice %226 {offsets = [0, 128], sizes = [8, 128], strides = [1, 1]} : vector<8x512xf32> to vector<8x128xf32>
    %234 = arith.negf %233 : vector<8x128xf32>
    %235 = math.exp %234 : vector<8x128xf32>
    %cst_59 = arith.constant 1.000000e+00 : f32
    %236 = vector.broadcast %cst_59 : f32 to vector<8x128xf32>
    %237 = arith.addf %236, %235 : vector<8x128xf32>
    %238 = arith.divf %236, %237 : vector<8x128xf32>
    %239 = vector.extract_strided_slice %226 {offsets = [0, 256], sizes = [8, 128], strides = [1, 1]} : vector<8x512xf32> to vector<8x128xf32>
    %240 = math.tanh %239 : vector<8x128xf32>
    %241 = vector.extract_strided_slice %226 {offsets = [0, 384], sizes = [8, 128], strides = [1, 1]} : vector<8x512xf32> to vector<8x128xf32>
    %242 = arith.negf %241 : vector<8x128xf32>
    %243 = math.exp %242 : vector<8x128xf32>
    %cst_60 = arith.constant 1.000000e+00 : f32
    %244 = vector.broadcast %cst_60 : f32 to vector<8x128xf32>
    %245 = arith.addf %244, %243 : vector<8x128xf32>
    %246 = arith.divf %244, %245 : vector<8x128xf32>
    %247 = arith.mulf %238, %216 : vector<8x128xf32>
    %248 = arith.mulf %232, %240 : vector<8x128xf32>
    %249 = arith.addf %247, %248 : vector<8x128xf32>
    %250 = math.tanh %249 : vector<8x128xf32>
    %251 = arith.mulf %246, %250 : vector<8x128xf32>
    %252 = vector.broadcast %220 : i32 to vector<8x1xi32>
    %253 = arith.cmpi slt, %252, %10 : vector<8x1xi32>
    %cst_61 = arith.constant 0.000000e+00 : f32
    %254 = vector.shape_cast %253 : vector<8x1xi1> to vector<8x1xi1>
    %255 = vector.broadcast %254 : vector<8x1xi1> to vector<8x128xi1>
    %256 = vector.broadcast %cst_61 : f32 to vector<8x128xf32>
    %257 = arith.select %255, %251, %256 : vector<8x128xi1>, vector<8x128xf32>
    %258 = arith.index_cast %219 : i32 to index
    %c0_62 = arith.constant 0 : index
    %c0_63 = arith.constant 0 : index
    %259 = vector.load %arg5[%258, %c0_62, %c0_63] : memref<8x8x128xf32, #tpu.memory_space<vmem>>, vector<1x8x128xf32>
    %260 = vector.shape_cast %259 : vector<1x8x128xf32> to vector<8x128xf32>
    %261 = vector.shape_cast %257 : vector<8x128xf32> to vector<1x8x128xf32>
    tpu.vector_store %arg5[%258, %c0_62, %c0_63], %261 {strides = array<i32>} : memref<8x8x128xf32, #tpu.memory_space<vmem>>, vector<1x8x128xf32>,
    %262 = vector.shape_cast %253 : vector<8x1xi1> to vector<8x1xi1>
    %263 = vector.broadcast %262 : vector<8x1xi1> to vector<8x128xi1>
    %264 = arith.select %263, %251, %213 : vector<8x128xi1>, vector<8x128xf32>
    %265 = vector.shape_cast %253 : vector<8x1xi1> to vector<8x1xi1>
    %266 = vector.broadcast %265 : vector<8x1xi1> to vector<8x128xi1>
    %267 = arith.select %266, %249, %216 : vector<8x128xi1>, vector<8x128xf32>
    %c5_i32 = arith.constant 5 : i32
    %c0_i32_64 = arith.constant 0 : i32
    %268 = arith.cmpi eq, %arg0, %c0_i32_64 : i32
    %c7_i32_65 = arith.constant 7 : i32
    %269 = arith.subi %c7_i32_65, %c5_i32 : i32
    %270 = arith.select %268, %c5_i32, %269 : i32
    %271 = arith.addi %8, %270 : i32
    %272 = arith.index_cast %270 : i32 to index
    %c0_66 = arith.constant 0 : index
    %c0_67 = arith.constant 0 : index
    %273 = vector.load %arg3[%272, %c0_66, %c0_67] : memref<8x8x512xf32, #tpu.memory_space<vmem>>, vector<1x8x512xf32>
    %274 = vector.shape_cast %273 : vector<1x8x512xf32> to vector<8x512xf32>
    %275 = arith.truncf %264 : vector<8x128xf32> to vector<8x128xbf16>
    %cst_68 = arith.constant dense<0.000000e+00> : vector<8x512xf32>
    %276 = tpu.matmul %275, %9, %cst_68 {dimension_numbers = #tpu.dot_dimension_numbers<[1], [0], [0], [1], [0, 0, 1, 1], [], []>} : vector<8x128xbf16>, vector<128x512xbf16>, vector<8x512xf32> -> vector<8x512xf32>
    %277 = arith.addf %274, %276 : vector<8x512xf32>
    %278 = vector.extract_strided_slice %277 {offsets = [0, 0], sizes = [8, 128], strides = [1, 1]} : vector<8x512xf32> to vector<8x128xf32>
    %279 = arith.negf %278 : vector<8x128xf32>
    %280 = math.exp %279 : vector<8x128xf32>
    %cst_69 = arith.constant 1.000000e+00 : f32
    %281 = vector.broadcast %cst_69 : f32 to vector<8x128xf32>
    %282 = arith.addf %281, %280 : vector<8x128xf32>
    %283 = arith.divf %281, %282 : vector<8x128xf32>
    %284 = vector.extract_strided_slice %277 {offsets = [0, 128], sizes = [8, 128], strides = [1, 1]} : vector<8x512xf32> to vector<8x128xf32>
    %285 = arith.negf %284 : vector<8x128xf32>
    %286 = math.exp %285 : vector<8x128xf32>
    %cst_70 = arith.constant 1.000000e+00 : f32
    %287 = vector.broadcast %cst_70 : f32 to vector<8x128xf32>
    %288 = arith.addf %287, %286 : vector<8x128xf32>
    %289 = arith.divf %287, %288 : vector<8x128xf32>
    %290 = vector.extract_strided_slice %277 {offsets = [0, 256], sizes = [8, 128], strides = [1, 1]} : vector<8x512xf32> to vector<8x128xf32>
    %291 = math.tanh %290 : vector<8x128xf32>
    %292 = vector.extract_strided_slice %277 {offsets = [0, 384], sizes = [8, 128], strides = [1, 1]} : vector<8x512xf32> to vector<8x128xf32>
    %293 = arith.negf %292 : vector<8x128xf32>
    %294 = math.exp %293 : vector<8x128xf32>
    %cst_71 = arith.constant 1.000000e+00 : f32
    %295 = vector.broadcast %cst_71 : f32 to vector<8x128xf32>
    %296 = arith.addf %295, %294 : vector<8x128xf32>
    %297 = arith.divf %295, %296 : vector<8x128xf32>
    %298 = arith.mulf %289, %267 : vector<8x128xf32>
    %299 = arith.mulf %283, %291 : vector<8x128xf32>
    %300 = arith.addf %298, %299 : vector<8x128xf32>
    %301 = math.tanh %300 : vector<8x128xf32>
    %302 = arith.mulf %297, %301 : vector<8x128xf32>
    %303 = vector.broadcast %271 : i32 to vector<8x1xi32>
    %304 = arith.cmpi slt, %303, %10 : vector<8x1xi32>
    %cst_72 = arith.constant 0.000000e+00 : f32
    %305 = vector.shape_cast %304 : vector<8x1xi1> to vector<8x1xi1>
    %306 = vector.broadcast %305 : vector<8x1xi1> to vector<8x128xi1>
    %307 = vector.broadcast %cst_72 : f32 to vector<8x128xf32>
    %308 = arith.select %306, %302, %307 : vector<8x128xi1>, vector<8x128xf32>
    %309 = arith.index_cast %270 : i32 to index
    %c0_73 = arith.constant 0 : index
    %c0_74 = arith.constant 0 : index
    %310 = vector.load %arg5[%309, %c0_73, %c0_74] : memref<8x8x128xf32, #tpu.memory_space<vmem>>, vector<1x8x128xf32>
    %311 = vector.shape_cast %310 : vector<1x8x128xf32> to vector<8x128xf32>
    %312 = vector.shape_cast %308 : vector<8x128xf32> to vector<1x8x128xf32>
    tpu.vector_store %arg5[%309, %c0_73, %c0_74], %312 {strides = array<i32>} : memref<8x8x128xf32, #tpu.memory_space<vmem>>, vector<1x8x128xf32>,
    %313 = vector.shape_cast %304 : vector<8x1xi1> to vector<8x1xi1>
    %314 = vector.broadcast %313 : vector<8x1xi1> to vector<8x128xi1>
    %315 = arith.select %314, %302, %264 : vector<8x128xi1>, vector<8x128xf32>
    %316 = vector.shape_cast %304 : vector<8x1xi1> to vector<8x1xi1>
    %317 = vector.broadcast %316 : vector<8x1xi1> to vector<8x128xi1>
    %318 = arith.select %317, %300, %267 : vector<8x128xi1>, vector<8x128xf32>
    %c6_i32 = arith.constant 6 : i32
    %c0_i32_75 = arith.constant 0 : i32
    %319 = arith.cmpi eq, %arg0, %c0_i32_75 : i32
    %c7_i32_76 = arith.constant 7 : i32
    %320 = arith.subi %c7_i32_76, %c6_i32 : i32
    %321 = arith.select %319, %c6_i32, %320 : i32
    %322 = arith.addi %8, %321 : i32
    %323 = arith.index_cast %321 : i32 to index
    %c0_77 = arith.constant 0 : index
    %c0_78 = arith.constant 0 : index
    %324 = vector.load %arg3[%323, %c0_77, %c0_78] : memref<8x8x512xf32, #tpu.memory_space<vmem>>, vector<1x8x512xf32>
    %325 = vector.shape_cast %324 : vector<1x8x512xf32> to vector<8x512xf32>
    %326 = arith.truncf %315 : vector<8x128xf32> to vector<8x128xbf16>
    %cst_79 = arith.constant dense<0.000000e+00> : vector<8x512xf32>
    %327 = tpu.matmul %326, %9, %cst_79 {dimension_numbers = #tpu.dot_dimension_numbers<[1], [0], [0], [1], [0, 0, 1, 1], [], []>} : vector<8x128xbf16>, vector<128x512xbf16>, vector<8x512xf32> -> vector<8x512xf32>
    %328 = arith.addf %325, %327 : vector<8x512xf32>
    %329 = vector.extract_strided_slice %328 {offsets = [0, 0], sizes = [8, 128], strides = [1, 1]} : vector<8x512xf32> to vector<8x128xf32>
    %330 = arith.negf %329 : vector<8x128xf32>
    %331 = math.exp %330 : vector<8x128xf32>
    %cst_80 = arith.constant 1.000000e+00 : f32
    %332 = vector.broadcast %cst_80 : f32 to vector<8x128xf32>
    %333 = arith.addf %332, %331 : vector<8x128xf32>
    %334 = arith.divf %332, %333 : vector<8x128xf32>
    %335 = vector.extract_strided_slice %328 {offsets = [0, 128], sizes = [8, 128], strides = [1, 1]} : vector<8x512xf32> to vector<8x128xf32>
    %336 = arith.negf %335 : vector<8x128xf32>
    %337 = math.exp %336 : vector<8x128xf32>
    %cst_81 = arith.constant 1.000000e+00 : f32
    %338 = vector.broadcast %cst_81 : f32 to vector<8x128xf32>
    %339 = arith.addf %338, %337 : vector<8x128xf32>
    %340 = arith.divf %338, %339 : vector<8x128xf32>
    %341 = vector.extract_strided_slice %328 {offsets = [0, 256], sizes = [8, 128], strides = [1, 1]} : vector<8x512xf32> to vector<8x128xf32>
    %342 = math.tanh %341 : vector<8x128xf32>
    %343 = vector.extract_strided_slice %328 {offsets = [0, 384], sizes = [8, 128], strides = [1, 1]} : vector<8x512xf32> to vector<8x128xf32>
    %344 = arith.negf %343 : vector<8x128xf32>
    %345 = math.exp %344 : vector<8x128xf32>
    %cst_82 = arith.constant 1.000000e+00 : f32
    %346 = vector.broadcast %cst_82 : f32 to vector<8x128xf32>
    %347 = arith.addf %346, %345 : vector<8x128xf32>
    %348 = arith.divf %346, %347 : vector<8x128xf32>
    %349 = arith.mulf %340, %318 : vector<8x128xf32>
    %350 = arith.mulf %334, %342 : vector<8x128xf32>
    %351 = arith.addf %349, %350 : vector<8x128xf32>
    %352 = math.tanh %351 : vector<8x128xf32>
    %353 = arith.mulf %348, %352 : vector<8x128xf32>
    %354 = vector.broadcast %322 : i32 to vector<8x1xi32>
    %355 = arith.cmpi slt, %354, %10 : vector<8x1xi32>
    %cst_83 = arith.constant 0.000000e+00 : f32
    %356 = vector.shape_cast %355 : vector<8x1xi1> to vector<8x1xi1>
    %357 = vector.broadcast %356 : vector<8x1xi1> to vector<8x128xi1>
    %358 = vector.broadcast %cst_83 : f32 to vector<8x128xf32>
    %359 = arith.select %357, %353, %358 : vector<8x128xi1>, vector<8x128xf32>
    %360 = arith.index_cast %321 : i32 to index
    %c0_84 = arith.constant 0 : index
    %c0_85 = arith.constant 0 : index
    %361 = vector.load %arg5[%360, %c0_84, %c0_85] : memref<8x8x128xf32, #tpu.memory_space<vmem>>, vector<1x8x128xf32>
    %362 = vector.shape_cast %361 : vector<1x8x128xf32> to vector<8x128xf32>
    %363 = vector.shape_cast %359 : vector<8x128xf32> to vector<1x8x128xf32>
    tpu.vector_store %arg5[%360, %c0_84, %c0_85], %363 {strides = array<i32>} : memref<8x8x128xf32, #tpu.memory_space<vmem>>, vector<1x8x128xf32>,
    %364 = vector.shape_cast %355 : vector<8x1xi1> to vector<8x1xi1>
    %365 = vector.broadcast %364 : vector<8x1xi1> to vector<8x128xi1>
    %366 = arith.select %365, %353, %315 : vector<8x128xi1>, vector<8x128xf32>
    %367 = vector.shape_cast %355 : vector<8x1xi1> to vector<8x1xi1>
    %368 = vector.broadcast %367 : vector<8x1xi1> to vector<8x128xi1>
    %369 = arith.select %368, %351, %318 : vector<8x128xi1>, vector<8x128xf32>
    %c7_i32_86 = arith.constant 7 : i32
    %c0_i32_87 = arith.constant 0 : i32
    %370 = arith.cmpi eq, %arg0, %c0_i32_87 : i32
    %c7_i32_88 = arith.constant 7 : i32
    %371 = arith.subi %c7_i32_88, %c7_i32_86 : i32
    %372 = arith.select %370, %c7_i32_86, %371 : i32
    %373 = arith.addi %8, %372 : i32
    %374 = arith.index_cast %372 : i32 to index
    %c0_89 = arith.constant 0 : index
    %c0_90 = arith.constant 0 : index
    %375 = vector.load %arg3[%374, %c0_89, %c0_90] : memref<8x8x512xf32, #tpu.memory_space<vmem>>, vector<1x8x512xf32>
    %376 = vector.shape_cast %375 : vector<1x8x512xf32> to vector<8x512xf32>
    %377 = arith.truncf %366 : vector<8x128xf32> to vector<8x128xbf16>
    %cst_91 = arith.constant dense<0.000000e+00> : vector<8x512xf32>
    %378 = tpu.matmul %377, %9, %cst_91 {dimension_numbers = #tpu.dot_dimension_numbers<[1], [0], [0], [1], [0, 0, 1, 1], [], []>} : vector<8x128xbf16>, vector<128x512xbf16>, vector<8x512xf32> -> vector<8x512xf32>
    %379 = arith.addf %376, %378 : vector<8x512xf32>
    %380 = vector.extract_strided_slice %379 {offsets = [0, 0], sizes = [8, 128], strides = [1, 1]} : vector<8x512xf32> to vector<8x128xf32>
    %381 = arith.negf %380 : vector<8x128xf32>
    %382 = math.exp %381 : vector<8x128xf32>
    %cst_92 = arith.constant 1.000000e+00 : f32
    %383 = vector.broadcast %cst_92 : f32 to vector<8x128xf32>
    %384 = arith.addf %383, %382 : vector<8x128xf32>
    %385 = arith.divf %383, %384 : vector<8x128xf32>
    %386 = vector.extract_strided_slice %379 {offsets = [0, 128], sizes = [8, 128], strides = [1, 1]} : vector<8x512xf32> to vector<8x128xf32>
    %387 = arith.negf %386 : vector<8x128xf32>
    %388 = math.exp %387 : vector<8x128xf32>
    %cst_93 = arith.constant 1.000000e+00 : f32
    %389 = vector.broadcast %cst_93 : f32 to vector<8x128xf32>
    %390 = arith.addf %389, %388 : vector<8x128xf32>
    %391 = arith.divf %389, %390 : vector<8x128xf32>
    %392 = vector.extract_strided_slice %379 {offsets = [0, 256], sizes = [8, 128], strides = [1, 1]} : vector<8x512xf32> to vector<8x128xf32>
    %393 = math.tanh %392 : vector<8x128xf32>
    %394 = vector.extract_strided_slice %379 {offsets = [0, 384], sizes = [8, 128], strides = [1, 1]} : vector<8x512xf32> to vector<8x128xf32>
    %395 = arith.negf %394 : vector<8x128xf32>
    %396 = math.exp %395 : vector<8x128xf32>
    %cst_94 = arith.constant 1.000000e+00 : f32
    %397 = vector.broadcast %cst_94 : f32 to vector<8x128xf32>
    %398 = arith.addf %397, %396 : vector<8x128xf32>
    %399 = arith.divf %397, %398 : vector<8x128xf32>
    %400 = arith.mulf %391, %369 : vector<8x128xf32>
    %401 = arith.mulf %385, %393 : vector<8x128xf32>
    %402 = arith.addf %400, %401 : vector<8x128xf32>
    %403 = math.tanh %402 : vector<8x128xf32>
    %404 = arith.mulf %399, %403 : vector<8x128xf32>
    %405 = vector.broadcast %373 : i32 to vector<8x1xi32>
    %406 = arith.cmpi slt, %405, %10 : vector<8x1xi32>
    %cst_95 = arith.constant 0.000000e+00 : f32
    %407 = vector.shape_cast %406 : vector<8x1xi1> to vector<8x1xi1>
    %408 = vector.broadcast %407 : vector<8x1xi1> to vector<8x128xi1>
    %409 = vector.broadcast %cst_95 : f32 to vector<8x128xf32>
    %410 = arith.select %408, %404, %409 : vector<8x128xi1>, vector<8x128xf32>
    %411 = arith.index_cast %372 : i32 to index
    %c0_96 = arith.constant 0 : index
    %c0_97 = arith.constant 0 : index
    %412 = vector.load %arg5[%411, %c0_96, %c0_97] : memref<8x8x128xf32, #tpu.memory_space<vmem>>, vector<1x8x128xf32>
    %413 = vector.shape_cast %412 : vector<1x8x128xf32> to vector<8x128xf32>
    %414 = vector.shape_cast %410 : vector<8x128xf32> to vector<1x8x128xf32>
    tpu.vector_store %arg5[%411, %c0_96, %c0_97], %414 {strides = array<i32>} : memref<8x8x128xf32, #tpu.memory_space<vmem>>, vector<1x8x128xf32>,
    %415 = vector.shape_cast %406 : vector<8x1xi1> to vector<8x1xi1>
    %416 = vector.broadcast %415 : vector<8x1xi1> to vector<8x128xi1>
    %417 = arith.select %416, %404, %366 : vector<8x128xi1>, vector<8x128xf32>
    %418 = vector.shape_cast %406 : vector<8x1xi1> to vector<8x1xi1>
    %419 = vector.broadcast %418 : vector<8x1xi1> to vector<8x128xi1>
    %420 = arith.select %419, %402, %369 : vector<8x128xi1>, vector<8x128xf32>
    %c8_i32_98 = arith.constant 8 : i32
    %c0_99 = arith.constant 0 : index
    %c0_100 = arith.constant 0 : index
    %421 = vector.load %arg6[%c0_99, %c0_100] : memref<8x128xf32, #tpu.memory_space<vmem>>, vector<8x128xf32>
    tpu.vector_store %arg6[%c0_99, %c0_100], %417 {strides = array<i32>} : memref<8x128xf32, #tpu.memory_space<vmem>>, vector<8x128xf32>,
    %c0_101 = arith.constant 0 : index
    %c0_102 = arith.constant 0 : index
    %422 = vector.load %arg7[%c0_101, %c0_102] : memref<8x128xf32, #tpu.memory_space<vmem>>, vector<8x128xf32>
    tpu.vector_store %arg7[%c0_101, %c0_102], %420 {strides = array<i32>} : memref<8x128xf32, #tpu.memory_space<vmem>>, vector<8x128xf32>,
    return
  }
  func.func @transform_0(%arg0: i32, %arg1: i32) -> (i32, i32) {
    %c0_i32 = arith.constant 0 : i32
    %c0_i32_0 = arith.constant 0 : i32
    %c0_i32_1 = arith.constant 0 : i32
    return %c0_i32, %c0_i32_0 : i32, i32
  }
  func.func @transform_1(%arg0: i32, %arg1: i32) -> (i32, i32, i32) {
    %c1_i32 = arith.constant 1 : i32
    %0 = arith.subi %c1_i32, %arg0 : i32
    %1 = arith.muli %0, %arg1 : i32
    %c0_i32 = arith.constant 0 : i32
    %2 = arith.subi %c0_i32, %arg1 : i32
    %3 = arith.muli %arg0, %2 : i32
    %4 = arith.addi %1, %3 : i32
    %c0_i32_0 = arith.constant 0 : i32
    %c0_i32_1 = arith.constant 0 : i32
    return %4, %c0_i32_0, %arg0 : i32, i32, i32
  }
  func.func @transform_2(%arg0: i32, %arg1: i32) -> (i32, i32) {
    %c0_i32 = arith.constant 0 : i32
    %c0_i32_0 = arith.constant 0 : i32
    return %c0_i32, %arg0 : i32, i32
  }
  func.func @transform_3(%arg0: i32, %arg1: i32) -> (i32, i32, i32) {
    %c1_i32 = arith.constant 1 : i32
    %0 = arith.subi %c1_i32, %arg0 : i32
    %1 = arith.muli %0, %arg1 : i32
    %c0_i32 = arith.constant 0 : i32
    %2 = arith.subi %c0_i32, %arg1 : i32
    %3 = arith.muli %arg0, %2 : i32
    %4 = arith.addi %1, %3 : i32
    %c0_i32_0 = arith.constant 0 : i32
    %c0_i32_1 = arith.constant 0 : i32
    return %4, %c0_i32_0, %arg0 : i32, i32, i32
  }
}

</mosaic_0001>

<llo_original>
// kernel: mt_lstm_forward.2
$region0: #{mt_lstm_forward.2}
  #allocation0 [shape = 'u32[]', space=smem, size = 0x4, offset = 0x4, fixed_abs, tag = 'smem constant byte address 0x4 - core index']
  #allocation1 [shape = 'u32[144,128]{1,0:T(1,128)}', space=vmem, size = 0x12000, scoped, tag = 'internal scratch']
  #allocation2 [shape = 'f32[8,128]{1,0:T(8,128)}', space=vmem, size = 0x1000, scoped, tag = 'scratch operand']
  #allocation3 [shape = 'f32[8,128]{1,0:T(8,128)}', space=vmem, size = 0x1000, scoped, tag = 'scratch operand']
  %s0 = inlined_call_operand.vmem [shape: s32[8,1], index: 0, kind: input, shape index: {}]
  %s1 = inlined_call_operand.vmem [shape: f32[8,8,1024], index: 1, kind: input, shape index: {}]
  %s2 = inlined_call_operand.vmem [shape: bf16[128,1024], index: 2, kind: input, shape index: {}]
  %s3 = inlined_call_operand.vmem [shape: f32[8,8,256], index: 3, kind: output, shape index: {}]
  %s4 = sld [smem:[#allocation0]]
  $region129: #{mt_lstm_forward.2} parent=0
    _
  %s6 = ssub.s32 1, %s4
  %s7 = scalar_select 0, %s6, %s4
  $region1: #{mt_lstm_forward.2} parent=0
    #allocation4 [shape = 'u8[262144]{0}', space=vmem, size = 0x40000, scoped, tag = 'input window, operand 1']
    #allocation5 [shape = 'u8[262144]{0}', space=vmem, size = 0x40000, scoped, tag = 'input window, operand 2']
    #allocation6 [shape = 'u8[65536]{0}', space=vmem, size = 0x10000, scoped, tag = 'output window, operand 0']
    loop: start=0, step=1, limit=4
    $region2: #{mt_lstm_forward.2} parent=1 // loop_pre_header
      _
    $region3: #{mt_lstm_forward.2} parent=1 // loop_header
      %s9 = sphi 0, %s13
      %p10 = scmp.ge.s32.totalorder %s9, 4
      %s16 = sphi 0, %s28
      %s17 = sphi 0, %s24
      %s18 = sphi 0, %s16
      %s19 = sphi 0, %s17
      %s20 = sphi 0, %s18
      %s21 = sphi 0, %s19
      %s29 = sphi 0, %s29
      %s31 = sphi 0, %s29
      %s32 = sphi 0, %s31
      %s46 = sphi 0, %s32
      %s64 = sphi 0, %s66
      %s67 = sphi 0, %s64
      %s68 = sphi 0, %s67
      %s84 = sphi 0, %s68
      %s90 = sphi 0, %s92
      %s93 = sphi 0, %s90
      %s94 = sphi 0, %s93
      %s110 = sphi 0, %s94
      %s128 = sphi 0, %s130
      %s131 = sphi 0, %s128
      %s132 = sphi 0, %s131
      %s148 = sphi 0, %s132
    $region4: #{mt_lstm_forward.2} parent=1 // loop_header_branch
      %12 = sbr.rel (%p10) target = $region8
    $region5: #{mt_lstm_forward.2} parent=1 // loop_body
      %s14 = ssub.s32 %s9, 1
      %s15 = ssub.s32 %s9, 2
      %s22 = sadd.s32 1, %s17
      %p23 = scmp.ge.s32.totalorder %s22, 1
      %s24 = scalar_select %p23, 0, %s22
      %s25 = sadd.s32 1, %s16
      %s26 = scalar_select %p23, %s25, %s16
      %p27 = scmp.ge.s32.totalorder %s26, 2
      %s28 = scalar_select %p27, 0, %s26
      %s30 = sadd.s32 %s29, 1
      %p33 = scmp.eq.s32.totalorder %s9, 1
      %p34 = scmp.ne.s32.totalorder %s29, %s31
      %p35 = scmp.eq.s32.totalorder %s9, 0
      %p36 = por %p34, %p35
      %p37 = scmp.ne.s32.totalorder %s29, %s31
      %p38 = scmp.eq.s32.totalorder %s14, 1
      %p39 = por %p37, %p38
      %p40 = scmp.ne.s32.totalorder %s31, %s32
      %p41 = scmp.eq.s32.totalorder %s14, 0
      %p42 = por %p40, %p41
      %p43 = scmp.ne.s32.totalorder %s31, %s32
      %p44 = scmp.eq.s32.totalorder %s15, 1
      %p45 = por %p43, %p44
      %p47 = scmp.ne.s32.totalorder %s32, %s46
      %p48 = scmp.eq.s32.totalorder %s15, 0
      %p49 = por %p47, %p48
      %s50 = ssub.s32 1, %s16
      %s51 = smul.u32 %s50, %s17
      %s52 = ssub.s32 0, %s17
      %s53 = smul.u32 %s16, %s52
      %s54 = sadd.s32 %s51, %s53
      %s55 = ssub.s32 1, %s28
      %s56 = smul.u32 %s55, %s24
      %s57 = ssub.s32 0, %s24
      %s58 = smul.u32 %s28, %s57
      %s59 = sadd.s32 %s56, %s58
      %s60 = ssub.s32 %s54, %s59
      %s61 = ssub.s32 %s16, %s28
      %s62 = sor.u32 %s60, %s61
      %p63 = scmp.eq.s32.totalorder %s62, 0
      %s65 = sadd.s32 %s64, 1
      %s66 = scalar_select %p63, %s64, %s65
      %p69 = pneg %p63
      %p70 = scmp.eq.s32.totalorder %s9, 1
      %p71 = por %p69, %p70
      %p72 = scmp.ne.s32.totalorder %s64, %s67
      %p73 = scmp.eq.s32.totalorder %s9, 0
      %p74 = por %p72, %p73
      %p75 = scmp.ne.s32.totalorder %s64, %s67
      %p76 = scmp.eq.s32.totalorder %s14, 1
      %p77 = por %p75, %p76
      %p78 = scmp.ne.s32.totalorder %s67, %s68
      %p79 = scmp.eq.s32.totalorder %s14, 0
      %p80 = por %p78, %p79
      %p81 = scmp.ne.s32.totalorder %s67, %s68
      %p82 = scmp.eq.s32.totalorder %s15, 1
      %p83 = por %p81, %p82
      %p85 = scmp.ne.s32.totalorder %s68, %s84
      %p86 = scmp.eq.s32.totalorder %s15, 0
      %p87 = por %p85, %p86
      %s88 = ssub.s32 %s16, %s28
      %p89 = scmp.eq.s32.totalorder %s88, 0
      %s91 = sadd.s32 %s90, 1
      %s92 = scalar_select %p89, %s90, %s91
      %p95 = pneg %p89
      %p96 = scmp.eq.s32.totalorder %s9, 1
      %p97 = por %p95, %p96
      %p98 = scmp.ne.s32.totalorder %s90, %s93
      %p99 = scmp.eq.s32.totalorder %s9, 0
      %p100 = por %p98, %p99
      %p101 = scmp.ne.s32.totalorder %s90, %s93
      %p102 = scmp.eq.s32.totalorder %s14, 1
      %p103 = por %p101, %p102
      %p104 = scmp.ne.s32.totalorder %s93, %s94
      %p105 = scmp.eq.s32.totalorder %s14, 0
      %p106 = por %p104, %p105
      %p107 = scmp.ne.s32.totalorder %s93, %s94
      %p108 = scmp.eq.s32.totalorder %s15, 1
      %p109 = por %p107, %p108
      %p111 = scmp.ne.s32.totalorder %s94, %s110
      %p112 = scmp.eq.s32.totalorder %s15, 0
      %p113 = por %p111, %p112
      %s114 = ssub.s32 1, %s16
      %s115 = smul.u32 %s114, %s17
      %s116 = ssub.s32 0, %s17
      %s117 = smul.u32 %s16, %s116
      %s118 = sadd.s32 %s115, %s117
      %s119 = ssub.s32 1, %s28
      %s120 = smul.u32 %s119, %s24
      %s121 = ssub.s32 0, %s24
      %s122 = smul.u32 %s28, %s121
      %s123 = sadd.s32 %s120, %s122
      %s124 = ssub.s32 %s118, %s123
      %s125 = ssub.s32 %s16, %s28
      %s126 = sor.u32 %s124, %s125
      %p127 = scmp.eq.s32.totalorder %s126, 0
      %s129 = sadd.s32 %s128, 1
      %s130 = scalar_select %p127, %s128, %s129
      %p133 = pneg %p127
      %p134 = scmp.eq.s32.totalorder %s9, 1
      %p135 = por %p133, %p134
      %p136 = scmp.ne.s32.totalorder %s128, %s131
      %p137 = scmp.eq.s32.totalorder %s9, 0
      %p138 = por %p136, %p137
      %p139 = scmp.ne.s32.totalorder %s128, %s131
      %p140 = scmp.eq.s32.totalorder %s14, 1
      %p141 = por %p139, %p140
      %p142 = scmp.ne.s32.totalorder %s131, %s132
      %p143 = scmp.eq.s32.totalorder %s14, 0
      %p144 = por %p142, %p143
      %p145 = scmp.ne.s32.totalorder %s131, %s132
      %p146 = scmp.eq.s32.totalorder %s15, 1
      %p147 = por %p145, %p146
      %p149 = scmp.ne.s32.totalorder %s132, %s148
      %p150 = scmp.eq.s32.totalorder %s15, 0
      %p151 = por %p149, %p150
      %p152 = scmp.le.s32.totalorder 1, %s9
      %p153 = scmp.lt.s32.totalorder %s9, 3
      %p154 = pnand %p152, %p153
      %p155 = pneg %p154
      // Predicated region
      $region9: #{mt_lstm_forward.2} parent=5 // pred_check
        _
      $region10: #{mt_lstm_forward.2} parent=5 // pred_check_branch
        %157 = sbr.rel (%p154) target = $region12
      $region11: #{mt_lstm_forward.2} parent=5 // pred_region
        %s158 = ssub.s32 %s9, 1
        // Predicated region
        $region13: #{mt_lstm_forward.2} parent=11 // pred_check
          %p159 = pneg %p42
        $region14: #{mt_lstm_forward.2} parent=11 // pred_check_branch
          %161 = sbr.rel (%p159) target = $region16
        $region15: #{mt_lstm_forward.2} parent=11 // pred_region
          _
        $region16: #{mt_lstm_forward.2} parent=11 // pred_fallthru
          _
      $region12: #{mt_lstm_forward.2} parent=5 // pred_fallthru
        _
      %p162 = scmp.lt.s32.totalorder %s9, 2
      // Predicated region
      $region17: #{mt_lstm_forward.2} parent=5 // pred_check
        %p163 = pneg %p162
      $region18: #{mt_lstm_forward.2} parent=5 // pred_check_branch
        %165 = sbr.rel (%p163) target = $region20
      $region19: #{mt_lstm_forward.2} parent=5 // pred_region
        // Predicated region
        $region21: #{mt_lstm_forward.2} parent=19 // pred_check
          %p166 = pneg %p74
        $region22: #{mt_lstm_forward.2} parent=19 // pred_check_branch
          %168 = sbr.rel (%p166) target = $region24
        $region23: #{mt_lstm_forward.2} parent=19 // pred_region
          %s169 = sand.u32 %s64, 1
          %s170 = sand.u32 %s64, 1
          %s171 = smul.addr %s170, 256
          %s172 = scalar_lea.vmem [#allocation4], %s171
          %s173 = ssub.s32 1, %s16
          %s174 = smul.u32 %s173, %s17
          %s175 = ssub.s32 0, %s17
          %s176 = smul.u32 %s16, %s175
          %s177 = sadd.s32 %s174, %s176
          %s178 = smul.u32 8, %s177
          %s179 = smul.u32 4, %s16
          %s180 = smul.addr %s178, 8
          %s181 = sadd.s32 %s179, %s180
          %s182 = smul.addr %s181, 8
          %s183 = scalar_lea.vmem %s1, %s182
          // Predicated region
          $region25: #{mt_lstm_forward.2} parent=23 // pred_check
            _
          $region26: #{mt_lstm_forward.2} parent=23 // pred_check_branch
            %185 = sbr.rel (0) target = $region28
          $region27: #{mt_lstm_forward.2} parent=23 // pred_region
            // Predicated region
            $region29: #{mt_lstm_forward.2} parent=27 // pred_check
              _
            $region30: #{mt_lstm_forward.2} parent=27 // pred_check_branch
              %187 = sbr.rel (0) target = $region32
            $region31: #{mt_lstm_forward.2} parent=27 // pred_region
              loop: start=0, step=1, limit=1
              $region33: #{mt_lstm_forward.2} parent=31 // loop_pre_header
                _
              $region34: #{mt_lstm_forward.2} parent=31 // loop_header
                %s189 = sphi 0, %s193
                %p190 = scmp.ge.s32.totalorder %s189, 1
                %s194 = sphi %s183, %s183
                %s195 = sphi %s172, %s172
              $region35: #{mt_lstm_forward.2} parent=31 // loop_header_branch
                %192 = sbr.rel (%p190) target = $region39
              $region36: #{mt_lstm_forward.2} parent=31 // loop_body
                %v196 = vld [vmem:[%s194] sm:$0xff]
                %197 = vst [vmem:[%s195] sm:$0xff] %v196
                %v198 = vld [vmem:[%s194 + $0x8] sm:$0xff]
                %199 = vst [vmem:[%s195 + $0x8] sm:$0xff] %v198
                %v200 = vld [vmem:[%s194 + $0x10] sm:$0xff]
                %201 = vst [vmem:[%s195 + $0x10] sm:$0xff] %v200
                %v202 = vld [vmem:[%s194 + $0x18] sm:$0xff]
                %203 = vst [vmem:[%s195 + $0x18] sm:$0xff] %v202
                %v204 = vld [vmem:[%s194 + $0x40] sm:$0xff]
                %205 = vst [vmem:[%s195 + $0x20] sm:$0xff] %v204
                %v206 = vld [vmem:[%s194 + $0x48] sm:$0xff]
                %207 = vst [vmem:[%s195 + $0x28] sm:$0xff] %v206
                %v208 = vld [vmem:[%s194 + $0x50] sm:$0xff]
                %209 = vst [vmem:[%s195 + $0x30] sm:$0xff] %v208
                %v210 = vld [vmem:[%s194 + $0x58] sm:$0xff]
                %211 = vst [vmem:[%s195 + $0x38] sm:$0xff] %v210
                %v212 = vld [vmem:[%s194 + $0x80] sm:$0xff]
                %213 = vst [vmem:[%s195 + $0x40] sm:$0xff] %v212
                %v214 = vld [vmem:[%s194 + $0x88] sm:$0xff]
                %215 = vst [vmem:[%s195 + $0x48] sm:$0xff] %v214
                %v216 = vld [vmem:[%s194 + $0x90] sm:$0xff]
                %217 = vst [vmem:[%s195 + $0x50] sm:$0xff] %v216
                %v218 = vld [vmem:[%s194 + $0x98] sm:$0xff]
                %219 = vst [vmem:[%s195 + $0x58] sm:$0xff] %v218
                %v220 = vld [vmem:[%s194 + $0xc0] sm:$0xff]
                %221 = vst [vmem:[%s195 + $0x60] sm:$0xff] %v220
                %v222 = vld [vmem:[%s194 + $0xc8] sm:$0xff]
                %223 = vst [vmem:[%s195 + $0x68] sm:$0xff] %v222
                %v224 = vld [vmem:[%s194 + $0xd0] sm:$0xff]
                %225 = vst [vmem:[%s195 + $0x70] sm:$0xff] %v224
                %v226 = vld [vmem:[%s194 + $0xd8] sm:$0xff]
                %227 = vst [vmem:[%s195 + $0x78] sm:$0xff] %v226
                %v228 = vld [vmem:[%s194 + $0x100] sm:$0xff]
                %229 = vst [vmem:[%s195 + $0x80] sm:$0xff] %v228
                %v230 = vld [vmem:[%s194 + $0x108] sm:$0xff]
                %231 = vst [vmem:[%s195 + $0x88] sm:$0xff] %v230
                %v232 = vld [vmem:[%s194 + $0x110] sm:$0xff]
                %233 = vst [vmem:[%s195 + $0x90] sm:$0xff] %v232
                %v234 = vld [vmem:[%s194 + $0x118] sm:$0xff]
                %235 = vst [vmem:[%s195 + $0x98] sm:$0xff] %v234
                %v236 = vld [vmem:[%s194 + $0x140] sm:$0xff]
                %237 = vst [vmem:[%s195 + $0xa0] sm:$0xff] %v236
                %v238 = vld [vmem:[%s194 + $0x148] sm:$0xff]
                %239 = vst [vmem:[%s195 + $0xa8] sm:$0xff] %v238
                %v240 = vld [vmem:[%s194 + $0x150] sm:$0xff]
                %241 = vst [vmem:[%s195 + $0xb0] sm:$0xff] %v240
                %v242 = vld [vmem:[%s194 + $0x158] sm:$0xff]
                %243 = vst [vmem:[%s195 + $0xb8] sm:$0xff] %v242
                %v244 = vld [vmem:[%s194 + $0x180] sm:$0xff]
                %245 = vst [vmem:[%s195 + $0xc0] sm:$0xff] %v244
                %v246 = vld [vmem:[%s194 + $0x188] sm:$0xff]
                %247 = vst [vmem:[%s195 + $0xc8] sm:$0xff] %v246
                %v248 = vld [vmem:[%s194 + $0x190] sm:$0xff]
                %249 = vst [vmem:[%s195 + $0xd0] sm:$0xff] %v248
                %v250 = vld [vmem:[%s194 + $0x198] sm:$0xff]
                %251 = vst [vmem:[%s195 + $0xd8] sm:$0xff] %v250
                %v252 = vld [vmem:[%s194 + $0x1c0] sm:$0xff]
                %253 = vst [vmem:[%s195 + $0xe0] sm:$0xff] %v252
                %v254 = vld [vmem:[%s194 + $0x1c8] sm:$0xff]
                %255 = vst [vmem:[%s195 + $0xe8] sm:$0xff] %v254
                %v256 = vld [vmem:[%s194 + $0x1d0] sm:$0xff]
                %257 = vst [vmem:[%s195 + $0xf0] sm:$0xff] %v256
                %v258 = vld [vmem:[%s194 + $0x1d8] sm:$0xff]
                %259 = vst [vmem:[%s195 + $0xf8] sm:$0xff] %v258
              $region37: #{mt_lstm_forward.2} parent=31 // loop_footer
                %s193 = sadd.s32 1, %s189
              $region38: #{mt_lstm_forward.2} parent=31 // loop_footer_branch
                %188 = sbr.rel target = $region34
              $region39: #{mt_lstm_forward.2} parent=31 // loop_exit
                _
            $region32: #{mt_lstm_forward.2} parent=27 // pred_fallthru
              _
            // Predicated region
            $region40: #{mt_lstm_forward.2} parent=27 // pred_check
              _
            $region41: #{mt_lstm_forward.2} parent=27 // pred_check_branch
              %261 = sbr.rel target = $region43
            $region42: #{mt_lstm_forward.2} parent=27 // pred_region
              _
            $region43: #{mt_lstm_forward.2} parent=27 // pred_fallthru
              _
          $region28: #{mt_lstm_forward.2} parent=23 // pred_fallthru
            _
          %262 = vnop
        $region24: #{mt_lstm_forward.2} parent=19 // pred_fallthru
          _
        // Predicated region
        $region44: #{mt_lstm_forward.2} parent=19 // pred_check
          %p263 = pneg %p100
        $region45: #{mt_lstm_forward.2} parent=19 // pred_check_branch
          %265 = sbr.rel (%p263) target = $region47
        $region46: #{mt_lstm_forward.2} parent=19 // pred_region
          %s266 = sand.u32 %s90, 1
          %s267 = sand.u32 %s90, 1
          %s268 = smul.addr %s267, 256
          %s269 = scalar_lea.vmem [#allocation5], %s268
          %s270 = smul.u32 4, %s16
          %s271 = smul.addr %s270, 4
          %s272 = scalar_lea.vmem %s2, %s271
          // Predicated region
          $region48: #{mt_lstm_forward.2} parent=46 // pred_check
            _
          $region49: #{mt_lstm_forward.2} parent=46 // pred_check_branch
            %274 = sbr.rel (0) target = $region51
          $region50: #{mt_lstm_forward.2} parent=46 // pred_region
            // Predicated region
            $region52: #{mt_lstm_forward.2} parent=50 // pred_check
              _
            $region53: #{mt_lstm_forward.2} parent=50 // pred_check_branch
              %276 = sbr.rel (0) target = $region55
            $region54: #{mt_lstm_forward.2} parent=50 // pred_region
              loop: start=0, step=1, limit=1
              $region56: #{mt_lstm_forward.2} parent=54 // loop_pre_header
                _
              $region57: #{mt_lstm_forward.2} parent=54 // loop_header
                %s278 = sphi 0, %s282
                %p279 = scmp.ge.s32.totalorder %s278, 1
                %s283 = sphi %s272, %s272
                %s284 = sphi %s269, %s269
              $region58: #{mt_lstm_forward.2} parent=54 // loop_header_branch
                %281 = sbr.rel (%p279) target = $region62
              $region59: #{mt_lstm_forward.2} parent=54 // loop_body
                %v285 = vld [vmem:[%s283] sm:$0xff]
                %286 = vst [vmem:[%s284] sm:$0xff] %v285
                %v287 = vld [vmem:[%s283 + $0x8] sm:$0xff]
                %288 = vst [vmem:[%s284 + $0x8] sm:$0xff] %v287
                %v289 = vld [vmem:[%s283 + $0x20] sm:$0xff]
                %290 = vst [vmem:[%s284 + $0x10] sm:$0xff] %v289
                %v291 = vld [vmem:[%s283 + $0x28] sm:$0xff]
                %292 = vst [vmem:[%s284 + $0x18] sm:$0xff] %v291
                %v293 = vld [vmem:[%s283 + $0x40] sm:$0xff]
                %294 = vst [vmem:[%s284 + $0x20] sm:$0xff] %v293
                %v295 = vld [vmem:[%s283 + $0x48] sm:$0xff]
                %296 = vst [vmem:[%s284 + $0x28] sm:$0xff] %v295
                %v297 = vld [vmem:[%s283 + $0x60] sm:$0xff]
                %298 = vst [vmem:[%s284 + $0x30] sm:$0xff] %v297
                %v299 = vld [vmem:[%s283 + $0x68] sm:$0xff]
                %300 = vst [vmem:[%s284 + $0x38] sm:$0xff] %v299
                %v301 = vld [vmem:[%s283 + $0x80] sm:$0xff]
                %302 = vst [vmem:[%s284 + $0x40] sm:$0xff] %v301
                %v303 = vld [vmem:[%s283 + $0x88] sm:$0xff]
                %304 = vst [vmem:[%s284 + $0x48] sm:$0xff] %v303
                %v305 = vld [vmem:[%s283 + $0xa0] sm:$0xff]
                %306 = vst [vmem:[%s284 + $0x50] sm:$0xff] %v305
                %v307 = vld [vmem:[%s283 + $0xa8] sm:$0xff]
                %308 = vst [vmem:[%s284 + $0x58] sm:$0xff] %v307
                %v309 = vld [vmem:[%s283 + $0xc0] sm:$0xff]
                %310 = vst [vmem:[%s284 + $0x60] sm:$0xff] %v309
                %v311 = vld [vmem:[%s283 + $0xc8] sm:$0xff]
                %312 = vst [vmem:[%s284 + $0x68] sm:$0xff] %v311
                %v313 = vld [vmem:[%s283 + $0xe0] sm:$0xff]
                %314 = vst [vmem:[%s284 + $0x70] sm:$0xff] %v313
                %v315 = vld [vmem:[%s283 + $0xe8] sm:$0xff]
                %316 = vst [vmem:[%s284 + $0x78] sm:$0xff] %v315
                %v317 = vld [vmem:[%s283 + $0x100] sm:$0xff]
                %318 = vst [vmem:[%s284 + $0x80] sm:$0xff] %v317
                %v319 = vld [vmem:[%s283 + $0x108] sm:$0xff]
                %320 = vst [vmem:[%s284 + $0x88] sm:$0xff] %v319
                %v321 = vld [vmem:[%s283 + $0x120] sm:$0xff]
                %322 = vst [vmem:[%s284 + $0x90] sm:$0xff] %v321
                %v323 = vld [vmem:[%s283 + $0x128] sm:$0xff]
                %324 = vst [vmem:[%s284 + $0x98] sm:$0xff] %v323
                %v325 = vld [vmem:[%s283 + $0x140] sm:$0xff]
                %326 = vst [vmem:[%s284 + $0xa0] sm:$0xff] %v325
                %v327 = vld [vmem:[%s283 + $0x148] sm:$0xff]
                %328 = vst [vmem:[%s284 + $0xa8] sm:$0xff] %v327
                %v329 = vld [vmem:[%s283 + $0x160] sm:$0xff]
                %330 = vst [vmem:[%s284 + $0xb0] sm:$0xff] %v329
                %v331 = vld [vmem:[%s283 + $0x168] sm:$0xff]
                %332 = vst [vmem:[%s284 + $0xb8] sm:$0xff] %v331
                %v333 = vld [vmem:[%s283 + $0x180] sm:$0xff]
                %334 = vst [vmem:[%s284 + $0xc0] sm:$0xff] %v333
                %v335 = vld [vmem:[%s283 + $0x188] sm:$0xff]
                %336 = vst [vmem:[%s284 + $0xc8] sm:$0xff] %v335
                %v337 = vld [vmem:[%s283 + $0x1a0] sm:$0xff]
                %338 = vst [vmem:[%s284 + $0xd0] sm:$0xff] %v337
                %v339 = vld [vmem:[%s283 + $0x1a8] sm:$0xff]
                %340 = vst [vmem:[%s284 + $0xd8] sm:$0xff] %v339
                %v341 = vld [vmem:[%s283 + $0x1c0] sm:$0xff]
                %342 = vst [vmem:[%s284 + $0xe0] sm:$0xff] %v341
                %v343 = vld [vmem:[%s283 + $0x1c8] sm:$0xff]
                %344 = vst [vmem:[%s284 + $0xe8] sm:$0xff] %v343
                %v345 = vld [vmem:[%s283 + $0x1e0] sm:$0xff]
                %346 = vst [vmem:[%s284 + $0xf0] sm:$0xff] %v345
                %v347 = vld [vmem:[%s283 + $0x1e8] sm:$0xff]
                %348 = vst [vmem:[%s284 + $0xf8] sm:$0xff] %v347
              $region60: #{mt_lstm_forward.2} parent=54 // loop_footer
                %s282 = sadd.s32 1, %s278
              $region61: #{mt_lstm_forward.2} parent=54 // loop_footer_branch
                %277 = sbr.rel target = $region57
              $region62: #{mt_lstm_forward.2} parent=54 // loop_exit
                _
            $region55: #{mt_lstm_forward.2} parent=50 // pred_fallthru
              _
            // Predicated region
            $region63: #{mt_lstm_forward.2} parent=50 // pred_check
              _
            $region64: #{mt_lstm_forward.2} parent=50 // pred_check_branch
              %350 = sbr.rel target = $region66
            $region65: #{mt_lstm_forward.2} parent=50 // pred_region
              _
            $region66: #{mt_lstm_forward.2} parent=50 // pred_fallthru
              _
          $region51: #{mt_lstm_forward.2} parent=46 // pred_fallthru
            _
          %351 = vnop
        $region47: #{mt_lstm_forward.2} parent=19 // pred_fallthru
          _
      $region20: #{mt_lstm_forward.2} parent=5 // pred_fallthru
        _
      %p352 = scmp.le.s32.totalorder 1, %s9
      %p353 = scmp.lt.s32.totalorder %s9, 3
      %p354 = pnand %p352, %p353
      %p355 = pneg %p354
      // Predicated region
      $region67: #{mt_lstm_forward.2} parent=5 // pred_check
        _
      $region68: #{mt_lstm_forward.2} parent=5 // pred_check_branch
        %357 = sbr.rel (%p354) target = $region70
      $region69: #{mt_lstm_forward.2} parent=5 // pred_region
        %s358 = ssub.s32 %s9, 1
        %s359 = sand.u32 %s67, 1
        %s360 = sand.u32 %s67, 1
        %s361 = smul.addr %s360, 256
        %s362 = scalar_lea.vmem [#allocation4], %s361
        // Predicated region
        $region71: #{mt_lstm_forward.2} parent=69 // pred_check
          %p363 = pneg %p80
        $region72: #{mt_lstm_forward.2} parent=69 // pred_check_branch
          %365 = sbr.rel (%p363) target = $region74
        $region73: #{mt_lstm_forward.2} parent=69 // pred_region
          _
        $region74: #{mt_lstm_forward.2} parent=69 // pred_fallthru
          _
        %s366 = sand.u32 %s93, 1
        %s367 = sand.u32 %s93, 1
        %s368 = smul.addr %s367, 256
        %s369 = scalar_lea.vmem [#allocation5], %s368
        // Predicated region
        $region75: #{mt_lstm_forward.2} parent=69 // pred_check
          %p370 = pneg %p106
        $region76: #{mt_lstm_forward.2} parent=69 // pred_check_branch
          %372 = sbr.rel (%p370) target = $region78
        $region77: #{mt_lstm_forward.2} parent=69 // pred_region
          _
        $region78: #{mt_lstm_forward.2} parent=69 // pred_fallthru
          _
        %p373 = pneg %p42
        %p374 = pneg %p39
        %s375 = sand.u32 %s67, 1
        %s376 = sand.u32 %s67, 1
        %s377 = smul.addr %s376, 256
        %s378 = scalar_lea.vmem [#allocation4], %s377
        %p379 = pneg %p80
        %p380 = pneg %p77
        %s381 = sand.u32 %s93, 1
        %s382 = sand.u32 %s93, 1
        %s383 = smul.addr %s382, 256
        %s384 = scalar_lea.vmem [#allocation5], %s383
        %p385 = pneg %p106
        %p386 = pneg %p103
        %p387 = pneg %p144
        %p388 = pneg %p141
        %s389 = sand.u32 %s131, 1
        %s390 = sand.u32 %s131, 1
        %s391 = smul.addr %s390, 64
        %s392 = scalar_lea.vmem [#allocation6], %s391
        %s393 = ssub.s32 1, %s18
        %s394 = smul.u32 %s393, %s19
        %s395 = ssub.s32 0, %s19
        %s396 = smul.u32 %s18, %s395
        %s397 = sadd.s32 %s394, %s396
        %s398 = smul.u32 8, %s397
        %s399 = smul.u32 4, %s18
        %s400 = smul.u32 4, %s18
        %s401 = ssub.s32 1, %s18
        %s402 = smul.u32 %s401, %s19
        %s403 = ssub.s32 0, %s19
        %s404 = smul.u32 %s18, %s403
        %s405 = sadd.s32 %s402, %s404
        %s406 = smul.u32 8, %s405
        %p408 = scmp.eq.s32.totalorder %s19, 0
        // Predicated region
        $region79: #{mt_lstm_forward.2} parent=69 // pred_check
          %p409 = pneg %p408
        $region80: #{mt_lstm_forward.2} parent=69 // pred_check_branch
          %411 = sbr.rel (%p409) target = $region82
        $region81: #{mt_lstm_forward.2} parent=69 // pred_region
          %412 = vst [vmem:[#allocation2] sm:$0xff] 0.0
          %413 = vst [vmem:[#allocation3] sm:$0xff] 0.0
        $region82: #{mt_lstm_forward.2} parent=69 // pred_fallthru
          _
        %s414 = ssub.s32 1, %s18
        %s415 = smul.u32 %s414, %s19
        %s416 = ssub.s32 0, %s19
        %s417 = smul.u32 %s18, %s416
        %s418 = sadd.s32 %s415, %s417
        %s419 = smul.u32 %s418, 8
        %v420 = vld [vmem:[%s369] sm:$0xff]
        %v421 = vld [vmem:[%s369 + $0x8] sm:$0xff]
        %v422 = vld [vmem:[%s369 + $0x10] sm:$0xff]
        %v423 = vld [vmem:[%s369 + $0x18] sm:$0xff]
        %v424 = vld [vmem:[%s369 + $0x20] sm:$0xff]
        %v425 = vld [vmem:[%s369 + $0x28] sm:$0xff]
        %v426 = vld [vmem:[%s369 + $0x30] sm:$0xff]
        %v427 = vld [vmem:[%s369 + $0x38] sm:$0xff]
        %v428 = vld [vmem:[%s369 + $0x40] sm:$0xff]
        %v429 = vld [vmem:[%s369 + $0x48] sm:$0xff]
        %v430 = vld [vmem:[%s369 + $0x50] sm:$0xff]
        %v431 = vld [vmem:[%s369 + $0x58] sm:$0xff]
        %v432 = vld [vmem:[%s369 + $0x60] sm:$0xff]
        %v433 = vld [vmem:[%s369 + $0x68] sm:$0xff]
        %v434 = vld [vmem:[%s369 + $0x70] sm:$0xff]
        %v435 = vld [vmem:[%s369 + $0x78] sm:$0xff]
        %v436 = vld [vmem:[%s369 + $0x80] sm:$0xff]
        %v437 = vld [vmem:[%s369 + $0x88] sm:$0xff]
        %v438 = vld [vmem:[%s369 + $0x90] sm:$0xff]
        %v439 = vld [vmem:[%s369 + $0x98] sm:$0xff]
        %v440 = vld [vmem:[%s369 + $0xa0] sm:$0xff]
        %v441 = vld [vmem:[%s369 + $0xa8] sm:$0xff]
        %v442 = vld [vmem:[%s369 + $0xb0] sm:$0xff]
        %v443 = vld [vmem:[%s369 + $0xb8] sm:$0xff]
        %v444 = vld [vmem:[%s369 + $0xc0] sm:$0xff]
        %v445 = vld [vmem:[%s369 + $0xc8] sm:$0xff]
        %v446 = vld [vmem:[%s369 + $0xd0] sm:$0xff]
        %v447 = vld [vmem:[%s369 + $0xd8] sm:$0xff]
        %v448 = vld [vmem:[%s369 + $0xe0] sm:$0xff]
        %v449 = vld [vmem:[%s369 + $0xe8] sm:$0xff]
        %v450 = vld [vmem:[%s369 + $0xf0] sm:$0xff]
        %v451 = vld [vmem:[%s369 + $0xf8] sm:$0xff]
        %v452 = vld [vmem:[%s0] sm:$0xff]
        %v453 = vld [vmem:[#allocation2] sm:$0xff]
        %v454 = vld [vmem:[#allocation3] sm:$0xff]
        %p455 = scmp.eq.s32.totalorder %s18, 0
        %s456 = scalar_select %p455, 0, 7
        %s457 = sadd.s32 %s419, %s456
        %s458 = smul.u32 %s456, 4
        %s459 = smul.addr %s458, 8
        %s460 = scalar_lea.vmem %s362, %s459 [#allocation4]
        %v461 = vld [vmem:[%s460] sm:$0xff]
        %v462 = vld [vmem:[%s460 + $0x8] sm:$0xff]
        %v463 = vld [vmem:[%s460 + $0x10] sm:$0xff]
        %v464 = vld [vmem:[%s460 + $0x18] sm:$0xff]
        %v465 = vpack.c.bf16 %v453, %v453
        %v498 = vunpack.c.l.b16 %v420
        %v499 = vunpack.c.h.b16 %v420
        %v500 = vunpack.c.l.b16 %v421
        %v501 = vunpack.c.h.b16 %v421
        %v502 = vunpack.c.l.b16 %v422
        %v503 = vunpack.c.h.b16 %v422
        %v504 = vunpack.c.l.b16 %v423
        %v505 = vunpack.c.h.b16 %v423
        %v506 = vunpack.c.l.b16 %v424
        %v507 = vunpack.c.h.b16 %v424
        %v508 = vunpack.c.l.b16 %v425
        %v509 = vunpack.c.h.b16 %v425
        %v510 = vunpack.c.l.b16 %v426
        %v511 = vunpack.c.h.b16 %v426
        %v512 = vunpack.c.l.b16 %v427
        %v513 = vunpack.c.h.b16 %v427
        %v514 = vunpack.c.l.b16 %v428
        %v515 = vunpack.c.h.b16 %v428
        %v516 = vunpack.c.l.b16 %v429
        %v517 = vunpack.c.h.b16 %v429
        %v518 = vunpack.c.l.b16 %v430
        %v519 = vunpack.c.h.b16 %v430
        %v520 = vunpack.c.l.b16 %v431
        %v521 = vunpack.c.h.b16 %v431
        %v522 = vunpack.c.l.b16 %v432
        %v523 = vunpack.c.h.b16 %v432
        %v524 = vunpack.c.l.b16 %v433
        %v525 = vunpack.c.h.b16 %v433
        %v526 = vunpack.c.l.b16 %v434
        %v527 = vunpack.c.h.b16 %v434
        %v528 = vunpack.c.l.b16 %v435
        %v529 = vunpack.c.h.b16 %v435
        %v530 = vunpack.c.l.b16 %v436
        %v531 = vunpack.c.h.b16 %v436
        %v532 = vunpack.c.l.b16 %v437
        %v533 = vunpack.c.h.b16 %v437
        %v534 = vunpack.c.l.b16 %v438
        %v535 = vunpack.c.h.b16 %v438
        %v536 = vunpack.c.l.b16 %v439
        %v537 = vunpack.c.h.b16 %v439
        %v538 = vunpack.c.l.b16 %v440
        %v539 = vunpack.c.h.b16 %v440
        %v540 = vunpack.c.l.b16 %v441
        %v541 = vunpack.c.h.b16 %v441
        %v542 = vunpack.c.l.b16 %v442
        %v543 = vunpack.c.h.b16 %v442
        %v544 = vunpack.c.l.b16 %v443
        %v545 = vunpack.c.h.b16 %v443
        %v546 = vunpack.c.l.b16 %v444
        %v547 = vunpack.c.h.b16 %v444
        %v548 = vunpack.c.l.b16 %v445
        %v549 = vunpack.c.h.b16 %v445
        %v550 = vunpack.c.l.b16 %v446
        %v551 = vunpack.c.h.b16 %v446
        %v552 = vunpack.c.l.b16 %v447
        %v553 = vunpack.c.h.b16 %v447
        %v554 = vunpack.c.l.b16 %v448
        %v555 = vunpack.c.h.b16 %v448
        %v556 = vunpack.c.l.b16 %v449
        %v557 = vunpack.c.h.b16 %v449
        %v558 = vunpack.c.l.b16 %v450
        %v559 = vunpack.c.h.b16 %v450
        %v560 = vunpack.c.l.b16 %v451
        %v561 = vunpack.c.h.b16 %v451
        %v562 = vpack.c.b16 %v502, %v498
        %v563 = vpack.c.b16 %v503, %v499
        %v564 = vpack.c.b16 %v504, %v500
        %v565 = vpack.c.b16 %v505, %v501
        %v566 = vpack.c.b16 %v510, %v506
        %v567 = vpack.c.b16 %v511, %v507
        %v568 = vpack.c.b16 %v512, %v508
        %v569 = vpack.c.b16 %v513, %v509
        %v570 = vpack.c.b16 %v518, %v514
        %v571 = vpack.c.b16 %v519, %v515
        %v572 = vpack.c.b16 %v520, %v516
        %v573 = vpack.c.b16 %v521, %v517
        %v574 = vpack.c.b16 %v526, %v522
        %v575 = vpack.c.b16 %v527, %v523
        %v576 = vpack.c.b16 %v528, %v524
        %v577 = vpack.c.b16 %v529, %v525
        %v578 = vpack.c.b16 %v534, %v530
        %v579 = vpack.c.b16 %v535, %v531
        %v580 = vpack.c.b16 %v536, %v532
        %v581 = vpack.c.b16 %v537, %v533
        %v582 = vpack.c.b16 %v542, %v538
        %v583 = vpack.c.b16 %v543, %v539
        %v584 = vpack.c.b16 %v544, %v540
        %v585 = vpack.c.b16 %v545, %v541
        %v586 = vpack.c.b16 %v550, %v546
        %v587 = vpack.c.b16 %v551, %v547
        %v588 = vpack.c.b16 %v552, %v548
        %v589 = vpack.c.b16 %v553, %v549
        %v590 = vpack.c.b16 %v558, %v554
        %v591 = vpack.c.b16 %v559, %v555
        %v592 = vpack.c.b16 %v560, %v556
        %v593 = vpack.c.b16 %v561, %v557
        %626 = vmatprep.subr.bf16.mxu0 %v591
        %627 = vmatpush1.bf16.msra.mxu0 %v590
        %628 = vmatprep.subr.bf16.mxu0 %v587
        %629 = vmatpush1.bf16.msra.mxu0 %v586
        %630 = vmatprep.subr.bf16.mxu0 %v583
        %631 = vmatpush1.bf16.msra.mxu0 %v582
        %632 = vmatprep.subr.bf16.mxu0 %v579
        %633 = vmatpush1.bf16.msra.mxu0 %v578
        %634 = vmatprep.subr.bf16.mxu0 %v575
        %635 = vmatpush1.bf16.msra.mxu0 %v574
        %636 = vmatprep.subr.bf16.mxu0 %v571
        %637 = vmatpush1.bf16.msra.mxu0 %v570
        %638 = vmatprep.subr.bf16.mxu0 %v567
        %639 = vmatpush1.bf16.msra.mxu0 %v566
        %640 = vmatprep.subr.bf16.mxu0 %v563
        %641 = vmatpush1.bf16.msra.mxu0 %v562
        %642 = vmatprep.subr.bf16.mxu0 0
        %643 = vmatpush2.bf16.msra.mxu0 0
        %644 = vmatprep.subr.bf16.mxu0 0
        %645 = vmatpush2.bf16.msra.mxu0 0
        %646 = vmatprep.subr.bf16.mxu0 0
        %647 = vmatpush2.bf16.msra.mxu0 0
        %648 = vmatprep.subr.bf16.mxu0 0
        %649 = vmatpush2.bf16.msra.mxu0 0
        %650 = vmatprep.subr.bf16.mxu0 0
        %651 = vmatpush2.bf16.msra.mxu0 0
        %652 = vmatprep.subr.bf16.mxu0 0
        %653 = vmatpush2.bf16.msra.mxu0 0
        %654 = vmatprep.subr.bf16.mxu0 0
        %655 = vmatpush2.bf16.msra.mxu0 0
        %656 = vmatprep.subr.bf16.mxu0 0
        %657 = vmatpush2.bf16.msra.mxu0 0
        %658 = vmatprep.mubr.bf16.mxu0 0
        %659 = vmatmul.mubr.bf16.gmra.mxu0 %v465
        %v660 = vpop.f32.mrf.mxu0
        %v661 = vadd.f32 0.0, %v660
        %v662 = vpop.f32.mrf.mxu0
        %v663 = vadd.f32 0.0, %v662
        %v664 = vpop.f32.mrf.mxu0
        %v665 = vpop.f32.mrf.mxu0
        %666 = vdwg.mxu0
        %667 = vmatprep.subr.bf16.mxu0 %v593
        %668 = vmatpush1.bf16.msra.mxu0 %v592
        %669 = vmatprep.subr.bf16.mxu0 %v589
        %670 = vmatpush1.bf16.msra.mxu0 %v588
        %671 = vmatprep.subr.bf16.mxu0 %v585
        %672 = vmatpush1.bf16.msra.mxu0 %v584
        %673 = vmatprep.subr.bf16.mxu0 %v581
        %674 = vmatpush1.bf16.msra.mxu0 %v580
        %675 = vmatprep.subr.bf16.mxu0 %v577
        %676 = vmatpush1.bf16.msra.mxu0 %v576
        %677 = vmatprep.subr.bf16.mxu0 %v573
        %678 = vmatpush1.bf16.msra.mxu0 %v572
        %679 = vmatprep.subr.bf16.mxu0 %v569
        %680 = vmatpush1.bf16.msra.mxu0 %v568
        %681 = vmatprep.subr.bf16.mxu0 %v565
        %682 = vmatpush1.bf16.msra.mxu0 %v564
        %683 = vmatprep.subr.bf16.mxu0 0
        %684 = vmatpush2.bf16.msra.mxu0 0
        %685 = vmatprep.subr.bf16.mxu0 0
        %686 = vmatpush2.bf16.msra.mxu0 0
        %687 = vmatprep.subr.bf16.mxu0 0
        %688 = vmatpush2.bf16.msra.mxu0 0
        %689 = vmatprep.subr.bf16.mxu0 0
        %690 = vmatpush2.bf16.msra.mxu0 0
        %691 = vmatprep.subr.bf16.mxu0 0
        %692 = vmatpush2.bf16.msra.mxu0 0
        %693 = vmatprep.subr.bf16.mxu0 0
        %694 = vmatpush2.bf16.msra.mxu0 0
        %695 = vmatprep.subr.bf16.mxu0 0
        %696 = vmatpush2.bf16.msra.mxu0 0
        %697 = vmatprep.subr.bf16.mxu0 0
        %698 = vmatpush2.bf16.msra.mxu0 0
        %699 = vmatprep.mubr.bf16.mxu0 0
        %700 = vmatmul.mubr.bf16.gmra.mxu0 %v465
        %v701 = vpop.f32.mrf.mxu0
        %v702 = vadd.f32 0.0, %v701
        %v703 = vpop.f32.mrf.mxu0
        %v704 = vadd.f32 0.0, %v703
        %v705 = vpop.f32.mrf.mxu0
        %v706 = vpop.f32.mrf.mxu0
        %707 = vdwg.mxu0
        %v708 = vadd.f32 %v461, %v661
        %v709 = vadd.f32 %v462, %v663
        %v710 = vadd.f32 %v463, %v702
        %v711 = vadd.f32 %v464, %v704
        %v712 = vxor.u32 %v708, 2147483648
        %v713 = vmul.f32 %v712, 1.442695
        %v714 = vpow.pop %v713
        %v715 = vadd.f32 %v714, 1.0
        %v716 = vrcp.pop %v715
        %v717 = vmul.f32 1.0, %v716
        %v718 = vxor.u32 %v709, 2147483648
        %v719 = vmul.f32 %v718, 1.442695
        %v720 = vpow.pop %v719
        %v721 = vadd.f32 %v720, 1.0
        %v722 = vrcp.pop %v721
        %v723 = vmul.f32 1.0, %v722
        %v724 = vtanh.pop %v710
        %v725 = vxor.u32 %v711, 2147483648
        %v726 = vmul.f32 %v725, 1.442695
        %v727 = vpow.pop %v726
        %v728 = vadd.f32 %v727, 1.0
        %v729 = vrcp.pop %v728
        %v730 = vmul.f32 1.0, %v729
        %v731 = vmul.f32 %v723, %v454
        %v732 = vmul.f32 %v717, %v724
        %v733 = vadd.f32 %v731, %v732
        %v734 = vtanh.pop %v733
        %v735 = vmul.f32 %v730, %v734
        %v736 = vstv %s457
        %vm737 = vcmp.lt.s32.totalorder %v736, %v452
        %v738 = vsel %vm737, 1, 0
        %739 = vset.pattern.permute.xlu0 0
        %740 = vperm.xlu0 %739, %v738
        %v741 = vpop.permute.xlu0 %740
        %vm742 = vcmp.eq.s32.totalorder %v741, 1
        %v743 = vsel %vm742, %v735, 0.0
        %s744 = smul.u32 %s456, 8
        %s745 = scalar_lea.vmem %s392, %s744 [#allocation6]
        %746 = vst [vmem:[%s745] sm:$0xff] %v743
        %v747 = vsel %vm742, %v735, %v453
        %v748 = vsel %vm742, %v733, %v454
        %s749 = scalar_select %p455, 1, 6
        %s750 = sadd.s32 %s419, %s749
        %s751 = smul.u32 %s749, 4
        %s752 = smul.addr %s751, 8
        %s753 = scalar_lea.vmem %s362, %s752 [#allocation4]
        %v754 = vld [vmem:[%s753] sm:$0xff]
        %v755 = vld [vmem:[%s753 + $0x8] sm:$0xff]
        %v756 = vld [vmem:[%s753 + $0x10] sm:$0xff]
        %v757 = vld [vmem:[%s753 + $0x18] sm:$0xff]
        %v758 = vpack.c.bf16 %v747, %v747
        %759 = vmatprep.subr.bf16.mxu0 %v591
        %760 = vmatpush1.bf16.msra.mxu0 %v590
        %761 = vmatprep.subr.bf16.mxu0 %v587
        %762 = vmatpush1.bf16.msra.mxu0 %v586
        %763 = vmatprep.subr.bf16.mxu0 %v583
        %764 = vmatpush1.bf16.msra.mxu0 %v582
        %765 = vmatprep.subr.bf16.mxu0 %v579
        %766 = vmatpush1.bf16.msra.mxu0 %v578
        %767 = vmatprep.subr.bf16.mxu0 %v575
        %768 = vmatpush1.bf16.msra.mxu0 %v574
        %769 = vmatprep.subr.bf16.mxu0 %v571
        %770 = vmatpush1.bf16.msra.mxu0 %v570
        %771 = vmatprep.subr.bf16.mxu0 %v567
        %772 = vmatpush1.bf16.msra.mxu0 %v566
        %773 = vmatprep.subr.bf16.mxu0 %v563
        %774 = vmatpush1.bf16.msra.mxu0 %v562
        %775 = vmatprep.subr.bf16.mxu0 0
        %776 = vmatpush2.bf16.msra.mxu0 0
        %777 = vmatprep.subr.bf16.mxu0 0
        %778 = vmatpush2.bf16.msra.mxu0 0
        %779 = vmatprep.subr.bf16.mxu0 0
        %780 = vmatpush2.bf16.msra.mxu0 0
        %781 = vmatprep.subr.bf16.mxu0 0
        %782 = vmatpush2.bf16.msra.mxu0 0
        %783 = vmatprep.subr.bf16.mxu0 0
        %784 = vmatpush2.bf16.msra.mxu0 0
        %785 = vmatprep.subr.bf16.mxu0 0
        %786 = vmatpush2.bf16.msra.mxu0 0
        %787 = vmatprep.subr.bf16.mxu0 0
        %788 = vmatpush2.bf16.msra.mxu0 0
        %789 = vmatprep.subr.bf16.mxu0 0
        %790 = vmatpush2.bf16.msra.mxu0 0
        %791 = vmatprep.mubr.bf16.mxu0 0
        %792 = vmatmul.mubr.bf16.gmra.mxu0 %v758
        %v793 = vpop.f32.mrf.mxu0
        %v794 = vadd.f32 0.0, %v793
        %v795 = vpop.f32.mrf.mxu0
        %v796 = vadd.f32 0.0, %v795
        %v797 = vpop.f32.mrf.mxu0
        %v798 = vpop.f32.mrf.mxu0
        %799 = vdwg.mxu0
        %800 = vmatprep.subr.bf16.mxu0 %v593
        %801 = vmatpush1.bf16.msra.mxu0 %v592
        %802 = vmatprep.subr.bf16.mxu0 %v589
        %803 = vmatpush1.bf16.msra.mxu0 %v588
        %804 = vmatprep.subr.bf16.mxu0 %v585
        %805 = vmatpush1.bf16.msra.mxu0 %v584
        %806 = vmatprep.subr.bf16.mxu0 %v581
        %807 = vmatpush1.bf16.msra.mxu0 %v580
        %808 = vmatprep.subr.bf16.mxu0 %v577
        %809 = vmatpush1.bf16.msra.mxu0 %v576
        %810 = vmatprep.subr.bf16.mxu0 %v573
        %811 = vmatpush1.bf16.msra.mxu0 %v572
        %812 = vmatprep.subr.bf16.mxu0 %v569
        %813 = vmatpush1.bf16.msra.mxu0 %v568
        %814 = vmatprep.subr.bf16.mxu0 %v565
        %815 = vmatpush1.bf16.msra.mxu0 %v564
        %816 = vmatprep.subr.bf16.mxu0 0
        %817 = vmatpush2.bf16.msra.mxu0 0
        %818 = vmatprep.subr.bf16.mxu0 0
        %819 = vmatpush2.bf16.msra.mxu0 0
        %820 = vmatprep.subr.bf16.mxu0 0
        %821 = vmatpush2.bf16.msra.mxu0 0
        %822 = vmatprep.subr.bf16.mxu0 0
        %823 = vmatpush2.bf16.msra.mxu0 0
        %824 = vmatprep.subr.bf16.mxu0 0
        %825 = vmatpush2.bf16.msra.mxu0 0
        %826 = vmatprep.subr.bf16.mxu0 0
        %827 = vmatpush2.bf16.msra.mxu0 0
        %828 = vmatprep.subr.bf16.mxu0 0
        %829 = vmatpush2.bf16.msra.mxu0 0
        %830 = vmatprep.subr.bf16.mxu0 0
        %831 = vmatpush2.bf16.msra.mxu0 0
        %832 = vmatprep.mubr.bf16.mxu0 0
        %833 = vmatmul.mubr.bf16.gmra.mxu0 %v758
        %v834 = vpop.f32.mrf.mxu0
        %v835 = vadd.f32 0.0, %v834
        %v836 = vpop.f32.mrf.mxu0
        %v837 = vadd.f32 0.0, %v836
        %v838 = vpop.f32.mrf.mxu0
        %v839 = vpop.f32.mrf.mxu0
        %840 = vdwg.mxu0
        %v841 = vadd.f32 %v754, %v794
        %v842 = vadd.f32 %v755, %v796
        %v843 = vadd.f32 %v756, %v835
        %v844 = vadd.f32 %v757, %v837
        %v845 = vxor.u32 %v841, 2147483648
        %v846 = vmul.f32 %v845, 1.442695
        %v847 = vpow.pop %v846
        %v848 = vadd.f32 %v847, 1.0
        %v849 = vrcp.pop %v848
        %v850 = vmul.f32 1.0, %v849
        %v851 = vxor.u32 %v842, 2147483648
        %v852 = vmul.f32 %v851, 1.442695
        %v853 = vpow.pop %v852
        %v854 = vadd.f32 %v853, 1.0
        %v855 = vrcp.pop %v854
        %v856 = vmul.f32 1.0, %v855
        %v857 = vtanh.pop %v843
        %v858 = vxor.u32 %v844, 2147483648
        %v859 = vmul.f32 %v858, 1.442695
        %v860 = vpow.pop %v859
        %v861 = vadd.f32 %v860, 1.0
        %v862 = vrcp.pop %v861
        %v863 = vmul.f32 1.0, %v862
        %v864 = vmul.f32 %v856, %v748
        %v865 = vmul.f32 %v850, %v857
        %v866 = vadd.f32 %v864, %v865
        %v867 = vtanh.pop %v866
        %v868 = vmul.f32 %v863, %v867
        %v869 = vstv %s750
        %vm870 = vcmp.lt.s32.totalorder %v869, %v452
        %v871 = vsel %vm870, 1, 0
        %872 = vset.pattern.permute.xlu0 0
        %873 = vperm.xlu0 %872, %v871
        %v874 = vpop.permute.xlu0 %873
        %vm875 = vcmp.eq.s32.totalorder %v874, 1
        %v876 = vsel %vm875, %v868, 0.0
        %s877 = smul.u32 %s749, 8
        %s878 = scalar_lea.vmem %s392, %s877 [#allocation6]
        %879 = vst [vmem:[%s878] sm:$0xff] %v876
        %v880 = vsel %vm875, %v868, %v747
        %v881 = vsel %vm875, %v866, %v748
        %s882 = scalar_select %p455, 2, 5
        %s883 = sadd.s32 %s419, %s882
        %s884 = smul.u32 %s882, 4
        %s885 = smul.addr %s884, 8
        %s886 = scalar_lea.vmem %s362, %s885 [#allocation4]
        %v887 = vld [vmem:[%s886] sm:$0xff]
        %v888 = vld [vmem:[%s886 + $0x8] sm:$0xff]
        %v889 = vld [vmem:[%s886 + $0x10] sm:$0xff]
        %v890 = vld [vmem:[%s886 + $0x18] sm:$0xff]
        %v891 = vpack.c.bf16 %v880, %v880
        %892 = vmatprep.subr.bf16.mxu0 %v591
        %893 = vmatpush1.bf16.msra.mxu0 %v590
        %894 = vmatprep.subr.bf16.mxu0 %v587
        %895 = vmatpush1.bf16.msra.mxu0 %v586
        %896 = vmatprep.subr.bf16.mxu0 %v583
        %897 = vmatpush1.bf16.msra.mxu0 %v582
        %898 = vmatprep.subr.bf16.mxu0 %v579
        %899 = vmatpush1.bf16.msra.mxu0 %v578
        %900 = vmatprep.subr.bf16.mxu0 %v575
        %901 = vmatpush1.bf16.msra.mxu0 %v574
        %902 = vmatprep.subr.bf16.mxu0 %v571
        %903 = vmatpush1.bf16.msra.mxu0 %v570
        %904 = vmatprep.subr.bf16.mxu0 %v567
        %905 = vmatpush1.bf16.msra.mxu0 %v566
        %906 = vmatprep.subr.bf16.mxu0 %v563
        %907 = vmatpush1.bf16.msra.mxu0 %v562
        %908 = vmatprep.subr.bf16.mxu0 0
        %909 = vmatpush2.bf16.msra.mxu0 0
        %910 = vmatprep.subr.bf16.mxu0 0
        %911 = vmatpush2.bf16.msra.mxu0 0
        %912 = vmatprep.subr.bf16.mxu0 0
        %913 = vmatpush2.bf16.msra.mxu0 0
        %914 = vmatprep.subr.bf16.mxu0 0
        %915 = vmatpush2.bf16.msra.mxu0 0
        %916 = vmatprep.subr.bf16.mxu0 0
        %917 = vmatpush2.bf16.msra.mxu0 0
        %918 = vmatprep.subr.bf16.mxu0 0
        %919 = vmatpush2.bf16.msra.mxu0 0
        %920 = vmatprep.subr.bf16.mxu0 0
        %921 = vmatpush2.bf16.msra.mxu0 0
        %922 = vmatprep.subr.bf16.mxu0 0
        %923 = vmatpush2.bf16.msra.mxu0 0
        %924 = vmatprep.mubr.bf16.mxu0 0
        %925 = vmatmul.mubr.bf16.gmra.mxu0 %v891
        %v926 = vpop.f32.mrf.mxu0
        %v927 = vadd.f32 0.0, %v926
        %v928 = vpop.f32.mrf.mxu0
        %v929 = vadd.f32 0.0, %v928
        %v930 = vpop.f32.mrf.mxu0
        %v931 = vpop.f32.mrf.mxu0
        %932 = vdwg.mxu0
        %933 = vmatprep.subr.bf16.mxu0 %v593
        %934 = vmatpush1.bf16.msra.mxu0 %v592
        %935 = vmatprep.subr.bf16.mxu0 %v589
        %936 = vmatpush1.bf16.msra.mxu0 %v588
        %937 = vmatprep.subr.bf16.mxu0 %v585
        %938 = vmatpush1.bf16.msra.mxu0 %v584
        %939 = vmatprep.subr.bf16.mxu0 %v581
        %940 = vmatpush1.bf16.msra.mxu0 %v580
        %941 = vmatprep.subr.bf16.mxu0 %v577
        %942 = vmatpush1.bf16.msra.mxu0 %v576
        %943 = vmatprep.subr.bf16.mxu0 %v573
        %944 = vmatpush1.bf16.msra.mxu0 %v572
        %945 = vmatprep.subr.bf16.mxu0 %v569
        %946 = vmatpush1.bf16.msra.mxu0 %v568
        %947 = vmatprep.subr.bf16.mxu0 %v565
        %948 = vmatpush1.bf16.msra.mxu0 %v564
        %949 = vmatprep.subr.bf16.mxu0 0
        %950 = vmatpush2.bf16.msra.mxu0 0
        %951 = vmatprep.subr.bf16.mxu0 0
        %952 = vmatpush2.bf16.msra.mxu0 0
        %953 = vmatprep.subr.bf16.mxu0 0
        %954 = vmatpush2.bf16.msra.mxu0 0
        %955 = vmatprep.subr.bf16.mxu0 0
        %956 = vmatpush2.bf16.msra.mxu0 0
        %957 = vmatprep.subr.bf16.mxu0 0
        %958 = vmatpush2.bf16.msra.mxu0 0
        %959 = vmatprep.subr.bf16.mxu0 0
        %960 = vmatpush2.bf16.msra.mxu0 0
        %961 = vmatprep.subr.bf16.mxu0 0
        %962 = vmatpush2.bf16.msra.mxu0 0
        %963 = vmatprep.subr.bf16.mxu0 0
        %964 = vmatpush2.bf16.msra.mxu0 0
        %965 = vmatprep.mubr.bf16.mxu0 0
        %966 = vmatmul.mubr.bf16.gmra.mxu0 %v891
        %v967 = vpop.f32.mrf.mxu0
        %v968 = vadd.f32 0.0, %v967
        %v969 = vpop.f32.mrf.mxu0
        %v970 = vadd.f32 0.0, %v969
        %v971 = vpop.f32.mrf.mxu0
        %v972 = vpop.f32.mrf.mxu0
        %973 = vdwg.mxu0
        %v974 = vadd.f32 %v887, %v927
        %v975 = vadd.f32 %v888, %v929
        %v976 = vadd.f32 %v889, %v968
        %v977 = vadd.f32 %v890, %v970
        %v978 = vxor.u32 %v974, 2147483648
        %v979 = vmul.f32 %v978, 1.442695
        %v980 = vpow.pop %v979
        %v981 = vadd.f32 %v980, 1.0
        %v982 = vrcp.pop %v981
        %v983 = vmul.f32 1.0, %v982
        %v984 = vxor.u32 %v975, 2147483648
        %v985 = vmul.f32 %v984, 1.442695
        %v986 = vpow.pop %v985
        %v987 = vadd.f32 %v986, 1.0
        %v988 = vrcp.pop %v987
        %v989 = vmul.f32 1.0, %v988
        %v990 = vtanh.pop %v976
        %v991 = vxor.u32 %v977, 2147483648
        %v992 = vmul.f32 %v991, 1.442695
        %v993 = vpow.pop %v992
        %v994 = vadd.f32 %v993, 1.0
        %v995 = vrcp.pop %v994
        %v996 = vmul.f32 1.0, %v995
        %v997 = vmul.f32 %v989, %v881
        %v998 = vmul.f32 %v983, %v990
        %v999 = vadd.f32 %v997, %v998
        %v1000 = vtanh.pop %v999
        %v1001 = vmul.f32 %v996, %v1000
        %v1002 = vstv %s883
        %vm1003 = vcmp.lt.s32.totalorder %v1002, %v452
        %v1004 = vsel %vm1003, 1, 0
        %1005 = vset.pattern.permute.xlu0 0
        %1006 = vperm.xlu0 %1005, %v1004
        %v1007 = vpop.permute.xlu0 %1006
        %vm1008 = vcmp.eq.s32.totalorder %v1007, 1
        %v1009 = vsel %vm1008, %v1001, 0.0
        %s1010 = smul.u32 %s882, 8
        %s1011 = scalar_lea.vmem %s392, %s1010 [#allocation6]
        %1012 = vst [vmem:[%s1011] sm:$0xff] %v1009
        %v1013 = vsel %vm1008, %v1001, %v880
        %v1014 = vsel %vm1008, %v999, %v881
        %s1015 = scalar_select %p455, 3, 4
        %s1016 = sadd.s32 %s419, %s1015
        %s1017 = smul.u32 %s1015, 4
        %s1018 = smul.addr %s1017, 8
        %s1019 = scalar_lea.vmem %s362, %s1018 [#allocation4]
        %v1020 = vld [vmem:[%s1019] sm:$0xff]
        %v1021 = vld [vmem:[%s1019 + $0x8] sm:$0xff]
        %v1022 = vld [vmem:[%s1019 + $0x10] sm:$0xff]
        %v1023 = vld [vmem:[%s1019 + $0x18] sm:$0xff]
        %v1024 = vpack.c.bf16 %v1013, %v1013
        %1025 = vmatprep.subr.bf16.mxu0 %v591
        %1026 = vmatpush1.bf16.msra.mxu0 %v590
        %1027 = vmatprep.subr.bf16.mxu0 %v587
        %1028 = vmatpush1.bf16.msra.mxu0 %v586
        %1029 = vmatprep.subr.bf16.mxu0 %v583
        %1030 = vmatpush1.bf16.msra.mxu0 %v582
        %1031 = vmatprep.subr.bf16.mxu0 %v579
        %1032 = vmatpush1.bf16.msra.mxu0 %v578
        %1033 = vmatprep.subr.bf16.mxu0 %v575
        %1034 = vmatpush1.bf16.msra.mxu0 %v574
        %1035 = vmatprep.subr.bf16.mxu0 %v571
        %1036 = vmatpush1.bf16.msra.mxu0 %v570
        %1037 = vmatprep.subr.bf16.mxu0 %v567
        %1038 = vmatpush1.bf16.msra.mxu0 %v566
        %1039 = vmatprep.subr.bf16.mxu0 %v563
        %1040 = vmatpush1.bf16.msra.mxu0 %v562
        %1041 = vmatprep.subr.bf16.mxu0 0
        %1042 = vmatpush2.bf16.msra.mxu0 0
        %1043 = vmatprep.subr.bf16.mxu0 0
        %1044 = vmatpush2.bf16.msra.mxu0 0
        %1045 = vmatprep.subr.bf16.mxu0 0
        %1046 = vmatpush2.bf16.msra.mxu0 0
        %1047 = vmatprep.subr.bf16.mxu0 0
        %1048 = vmatpush2.bf16.msra.mxu0 0
        %1049 = vmatprep.subr.bf16.mxu0 0
        %1050 = vmatpush2.bf16.msra.mxu0 0
        %1051 = vmatprep.subr.bf16.mxu0 0
        %1052 = vmatpush2.bf16.msra.mxu0 0
        %1053 = vmatprep.subr.bf16.mxu0 0
        %1054 = vmatpush2.bf16.msra.mxu0 0
        %1055 = vmatprep.subr.bf16.mxu0 0
        %1056 = vmatpush2.bf16.msra.mxu0 0
        %1057 = vmatprep.mubr.bf16.mxu0 0
        %1058 = vmatmul.mubr.bf16.gmra.mxu0 %v1024
        %v1059 = vpop.f32.mrf.mxu0
        %v1060 = vadd.f32 0.0, %v1059
        %v1061 = vpop.f32.mrf.mxu0
        %v1062 = vadd.f32 0.0, %v1061
        %v1063 = vpop.f32.mrf.mxu0
        %v1064 = vpop.f32.mrf.mxu0
        %1065 = vdwg.mxu0
        %1066 = vmatprep.subr.bf16.mxu0 %v593
        %1067 = vmatpush1.bf16.msra.mxu0 %v592
        %1068 = vmatprep.subr.bf16.mxu0 %v589
        %1069 = vmatpush1.bf16.msra.mxu0 %v588
        %1070 = vmatprep.subr.bf16.mxu0 %v585
        %1071 = vmatpush1.bf16.msra.mxu0 %v584
        %1072 = vmatprep.subr.bf16.mxu0 %v581
        %1073 = vmatpush1.bf16.msra.mxu0 %v580
        %1074 = vmatprep.subr.bf16.mxu0 %v577
        %1075 = vmatpush1.bf16.msra.mxu0 %v576
        %1076 = vmatprep.subr.bf16.mxu0 %v573
        %1077 = vmatpush1.bf16.msra.mxu0 %v572
        %1078 = vmatprep.subr.bf16.mxu0 %v569
        %1079 = vmatpush1.bf16.msra.mxu0 %v568
        %1080 = vmatprep.subr.bf16.mxu0 %v565
        %1081 = vmatpush1.bf16.msra.mxu0 %v564
        %1082 = vmatprep.subr.bf16.mxu0 0
        %1083 = vmatpush2.bf16.msra.mxu0 0
        %1084 = vmatprep.subr.bf16.mxu0 0
        %1085 = vmatpush2.bf16.msra.mxu0 0
        %1086 = vmatprep.subr.bf16.mxu0 0
        %1087 = vmatpush2.bf16.msra.mxu0 0
        %1088 = vmatprep.subr.bf16.mxu0 0
        %1089 = vmatpush2.bf16.msra.mxu0 0
        %1090 = vmatprep.subr.bf16.mxu0 0
        %1091 = vmatpush2.bf16.msra.mxu0 0
        %1092 = vmatprep.subr.bf16.mxu0 0
        %1093 = vmatpush2.bf16.msra.mxu0 0
        %1094 = vmatprep.subr.bf16.mxu0 0
        %1095 = vmatpush2.bf16.msra.mxu0 0
        %1096 = vmatprep.subr.bf16.mxu0 0
        %1097 = vmatpush2.bf16.msra.mxu0 0
        %1098 = vmatprep.mubr.bf16.mxu0 0
        %1099 = vmatmul.mubr.bf16.gmra.mxu0 %v1024
        %v1100 = vpop.f32.mrf.mxu0
        %v1101 = vadd.f32 0.0, %v1100
        %v1102 = vpop.f32.mrf.mxu0
        %v1103 = vadd.f32 0.0, %v1102
        %v1104 = vpop.f32.mrf.mxu0
        %v1105 = vpop.f32.mrf.mxu0
        %1106 = vdwg.mxu0
        %v1107 = vadd.f32 %v1020, %v1060
        %v1108 = vadd.f32 %v1021, %v1062
        %v1109 = vadd.f32 %v1022, %v1101
        %v1110 = vadd.f32 %v1023, %v1103
        %v1111 = vxor.u32 %v1107, 2147483648
        %v1112 = vmul.f32 %v1111, 1.442695
        %v1113 = vpow.pop %v1112
        %v1114 = vadd.f32 %v1113, 1.0
        %v1115 = vrcp.pop %v1114
        %v1116 = vmul.f32 1.0, %v1115
        %v1117 = vxor.u32 %v1108, 2147483648
        %v1118 = vmul.f32 %v1117, 1.442695
        %v1119 = vpow.pop %v1118
        %v1120 = vadd.f32 %v1119, 1.0
        %v1121 = vrcp.pop %v1120
        %v1122 = vmul.f32 1.0, %v1121
        %v1123 = vtanh.pop %v1109
        %v1124 = vxor.u32 %v1110, 2147483648
        %v1125 = vmul.f32 %v1124, 1.442695
        %v1126 = vpow.pop %v1125
        %v1127 = vadd.f32 %v1126, 1.0
        %v1128 = vrcp.pop %v1127
        %v1129 = vmul.f32 1.0, %v1128
        %v1130 = vmul.f32 %v1122, %v1014
        %v1131 = vmul.f32 %v1116, %v1123
        %v1132 = vadd.f32 %v1130, %v1131
        %v1133 = vtanh.pop %v1132
        %v1134 = vmul.f32 %v1129, %v1133
        %v1135 = vstv %s1016
        %vm1136 = vcmp.lt.s32.totalorder %v1135, %v452
        %v1137 = vsel %vm1136, 1, 0
        %1138 = vset.pattern.permute.xlu0 0
        %1139 = vperm.xlu0 %1138, %v1137
        %v1140 = vpop.permute.xlu0 %1139
        %vm1141 = vcmp.eq.s32.totalorder %v1140, 1
        %v1142 = vsel %vm1141, %v1134, 0.0
        %s1143 = smul.u32 %s1015, 8
        %s1144 = scalar_lea.vmem %s392, %s1143 [#allocation6]
        %1145 = vst [vmem:[%s1144] sm:$0xff] %v1142
        %v1146 = vsel %vm1141, %v1134, %v1013
        %v1147 = vsel %vm1141, %v1132, %v1014
        %s1148 = scalar_select %p455, 4, 3
        %s1149 = sadd.s32 %s419, %s1148
        %s1150 = smul.u32 %s1148, 4
        %s1151 = smul.addr %s1150, 8
        %s1152 = scalar_lea.vmem %s362, %s1151 [#allocation4]
        %v1153 = vld [vmem:[%s1152] sm:$0xff]
        %v1154 = vld [vmem:[%s1152 + $0x8] sm:$0xff]
        %v1155 = vld [vmem:[%s1152 + $0x10] sm:$0xff]
        %v1156 = vld [vmem:[%s1152 + $0x18] sm:$0xff]
        %v1157 = vpack.c.bf16 %v1146, %v1146
        %1158 = vmatprep.subr.bf16.mxu0 %v591
        %1159 = vmatpush1.bf16.msra.mxu0 %v590
        %1160 = vmatprep.subr.bf16.mxu0 %v587
        %1161 = vmatpush1.bf16.msra.mxu0 %v586
        %1162 = vmatprep.subr.bf16.mxu0 %v583
        %1163 = vmatpush1.bf16.msra.mxu0 %v582
        %1164 = vmatprep.subr.bf16.mxu0 %v579
        %1165 = vmatpush1.bf16.msra.mxu0 %v578
        %1166 = vmatprep.subr.bf16.mxu0 %v575
        %1167 = vmatpush1.bf16.msra.mxu0 %v574
        %1168 = vmatprep.subr.bf16.mxu0 %v571
        %1169 = vmatpush1.bf16.msra.mxu0 %v570
        %1170 = vmatprep.subr.bf16.mxu0 %v567
        %1171 = vmatpush1.bf16.msra.mxu0 %v566
        %1172 = vmatprep.subr.bf16.mxu0 %v563
        %1173 = vmatpush1.bf16.msra.mxu0 %v562
        %1174 = vmatprep.subr.bf16.mxu0 0
        %1175 = vmatpush2.bf16.msra.mxu0 0
        %1176 = vmatprep.subr.bf16.mxu0 0
        %1177 = vmatpush2.bf16.msra.mxu0 0
        %1178 = vmatprep.subr.bf16.mxu0 0
        %1179 = vmatpush2.bf16.msra.mxu0 0
        %1180 = vmatprep.subr.bf16.mxu0 0
        %1181 = vmatpush2.bf16.msra.mxu0 0
        %1182 = vmatprep.subr.bf16.mxu0 0
        %1183 = vmatpush2.bf16.msra.mxu0 0
        %1184 = vmatprep.subr.bf16.mxu0 0
        %1185 = vmatpush2.bf16.msra.mxu0 0
        %1186 = vmatprep.subr.bf16.mxu0 0
        %1187 = vmatpush2.bf16.msra.mxu0 0
        %1188 = vmatprep.subr.bf16.mxu0 0
        %1189 = vmatpush2.bf16.msra.mxu0 0
        %1190 = vmatprep.mubr.bf16.mxu0 0
        %1191 = vmatmul.mubr.bf16.gmra.mxu0 %v1157
        %v1192 = vpop.f32.mrf.mxu0
        %v1193 = vadd.f32 0.0, %v1192
        %v1194 = vpop.f32.mrf.mxu0
        %v1195 = vadd.f32 0.0, %v1194
        %v1196 = vpop.f32.mrf.mxu0
        %v1197 = vpop.f32.mrf.mxu0
        %1198 = vdwg.mxu0
        %1199 = vmatprep.subr.bf16.mxu0 %v593
        %1200 = vmatpush1.bf16.msra.mxu0 %v592
        %1201 = vmatprep.subr.bf16.mxu0 %v589
        %1202 = vmatpush1.bf16.msra.mxu0 %v588
        %1203 = vmatprep.subr.bf16.mxu0 %v585
        %1204 = vmatpush1.bf16.msra.mxu0 %v584
        %1205 = vmatprep.subr.bf16.mxu0 %v581
        %1206 = vmatpush1.bf16.msra.mxu0 %v580
        %1207 = vmatprep.subr.bf16.mxu0 %v577
        %1208 = vmatpush1.bf16.msra.mxu0 %v576
        %1209 = vmatprep.subr.bf16.mxu0 %v573
        %1210 = vmatpush1.bf16.msra.mxu0 %v572
        %1211 = vmatprep.subr.bf16.mxu0 %v569
        %1212 = vmatpush1.bf16.msra.mxu0 %v568
        %1213 = vmatprep.subr.bf16.mxu0 %v565
        %1214 = vmatpush1.bf16.msra.mxu0 %v564
        %1215 = vmatprep.subr.bf16.mxu0 0
        %1216 = vmatpush2.bf16.msra.mxu0 0
        %1217 = vmatprep.subr.bf16.mxu0 0
        %1218 = vmatpush2.bf16.msra.mxu0 0
        %1219 = vmatprep.subr.bf16.mxu0 0
        %1220 = vmatpush2.bf16.msra.mxu0 0
        %1221 = vmatprep.subr.bf16.mxu0 0
        %1222 = vmatpush2.bf16.msra.mxu0 0
        %1223 = vmatprep.subr.bf16.mxu0 0
        %1224 = vmatpush2.bf16.msra.mxu0 0
        %1225 = vmatprep.subr.bf16.mxu0 0
        %1226 = vmatpush2.bf16.msra.mxu0 0
        %1227 = vmatprep.subr.bf16.mxu0 0
        %1228 = vmatpush2.bf16.msra.mxu0 0
        %1229 = vmatprep.subr.bf16.mxu0 0
        %1230 = vmatpush2.bf16.msra.mxu0 0
        %1231 = vmatprep.mubr.bf16.mxu0 0
        %1232 = vmatmul.mubr.bf16.gmra.mxu0 %v1157
        %v1233 = vpop.f32.mrf.mxu0
        %v1234 = vadd.f32 0.0, %v1233
        %v1235 = vpop.f32.mrf.mxu0
        %v1236 = vadd.f32 0.0, %v1235
        %v1237 = vpop.f32.mrf.mxu0
        %v1238 = vpop.f32.mrf.mxu0
        %1239 = vdwg.mxu0
        %v1240 = vadd.f32 %v1153, %v1193
        %v1241 = vadd.f32 %v1154, %v1195
        %v1242 = vadd.f32 %v1155, %v1234
        %v1243 = vadd.f32 %v1156, %v1236
        %v1244 = vxor.u32 %v1240, 2147483648
        %v1245 = vmul.f32 %v1244, 1.442695
        %v1246 = vpow.pop %v1245
        %v1247 = vadd.f32 %v1246, 1.0
        %v1248 = vrcp.pop %v1247
        %v1249 = vmul.f32 1.0, %v1248
        %v1250 = vxor.u32 %v1241, 2147483648
        %v1251 = vmul.f32 %v1250, 1.442695
        %v1252 = vpow.pop %v1251
        %v1253 = vadd.f32 %v1252, 1.0
        %v1254 = vrcp.pop %v1253
        %v1255 = vmul.f32 1.0, %v1254
        %v1256 = vtanh.pop %v1242
        %v1257 = vxor.u32 %v1243, 2147483648
        %v1258 = vmul.f32 %v1257, 1.442695
        %v1259 = vpow.pop %v1258
        %v1260 = vadd.f32 %v1259, 1.0
        %v1261 = vrcp.pop %v1260
        %v1262 = vmul.f32 1.0, %v1261
        %v1263 = vmul.f32 %v1255, %v1147
        %v1264 = vmul.f32 %v1249, %v1256
        %v1265 = vadd.f32 %v1263, %v1264
        %v1266 = vtanh.pop %v1265
        %v1267 = vmul.f32 %v1262, %v1266
        %v1268 = vstv %s1149
        %vm1269 = vcmp.lt.s32.totalorder %v1268, %v452
        %v1270 = vsel %vm1269, 1, 0
        %1271 = vset.pattern.permute.xlu0 0
        %1272 = vperm.xlu0 %1271, %v1270
        %v1273 = vpop.permute.xlu0 %1272
        %vm1274 = vcmp.eq.s32.totalorder %v1273, 1
        %v1275 = vsel %vm1274, %v1267, 0.0
        %s1276 = smul.u32 %s1148, 8
        %s1277 = scalar_lea.vmem %s392, %s1276 [#allocation6]
        %1278 = vst [vmem:[%s1277] sm:$0xff] %v1275
        %v1279 = vsel %vm1274, %v1267, %v1146
        %v1280 = vsel %vm1274, %v1265, %v1147
        %s1281 = scalar_select %p455, 5, 2
        %s1282 = sadd.s32 %s419, %s1281
        %s1283 = smul.u32 %s1281, 4
        %s1284 = smul.addr %s1283, 8
        %s1285 = scalar_lea.vmem %s362, %s1284 [#allocation4]
        %v1286 = vld [vmem:[%s1285] sm:$0xff]
        %v1287 = vld [vmem:[%s1285 + $0x8] sm:$0xff]
        %v1288 = vld [vmem:[%s1285 + $0x10] sm:$0xff]
        %v1289 = vld [vmem:[%s1285 + $0x18] sm:$0xff]
        %v1290 = vpack.c.bf16 %v1279, %v1279
        %1291 = vmatprep.subr.bf16.mxu0 %v591
        %1292 = vmatpush1.bf16.msra.mxu0 %v590
        %1293 = vmatprep.subr.bf16.mxu0 %v587
        %1294 = vmatpush1.bf16.msra.mxu0 %v586
        %1295 = vmatprep.subr.bf16.mxu0 %v583
        %1296 = vmatpush1.bf16.msra.mxu0 %v582
        %1297 = vmatprep.subr.bf16.mxu0 %v579
        %1298 = vmatpush1.bf16.msra.mxu0 %v578
        %1299 = vmatprep.subr.bf16.mxu0 %v575
        %1300 = vmatpush1.bf16.msra.mxu0 %v574
        %1301 = vmatprep.subr.bf16.mxu0 %v571
        %1302 = vmatpush1.bf16.msra.mxu0 %v570
        %1303 = vmatprep.subr.bf16.mxu0 %v567
        %1304 = vmatpush1.bf16.msra.mxu0 %v566
        %1305 = vmatprep.subr.bf16.mxu0 %v563
        %1306 = vmatpush1.bf16.msra.mxu0 %v562
        %1307 = vmatprep.subr.bf16.mxu0 0
        %1308 = vmatpush2.bf16.msra.mxu0 0
        %1309 = vmatprep.subr.bf16.mxu0 0
        %1310 = vmatpush2.bf16.msra.mxu0 0
        %1311 = vmatprep.subr.bf16.mxu0 0
        %1312 = vmatpush2.bf16.msra.mxu0 0
        %1313 = vmatprep.subr.bf16.mxu0 0
        %1314 = vmatpush2.bf16.msra.mxu0 0
        %1315 = vmatprep.subr.bf16.mxu0 0
        %1316 = vmatpush2.bf16.msra.mxu0 0
        %1317 = vmatprep.subr.bf16.mxu0 0
        %1318 = vmatpush2.bf16.msra.mxu0 0
        %1319 = vmatprep.subr.bf16.mxu0 0
        %1320 = vmatpush2.bf16.msra.mxu0 0
        %1321 = vmatprep.subr.bf16.mxu0 0
        %1322 = vmatpush2.bf16.msra.mxu0 0
        %1323 = vmatprep.mubr.bf16.mxu0 0
        %1324 = vmatmul.mubr.bf16.gmra.mxu0 %v1290
        %v1325 = vpop.f32.mrf.mxu0
        %v1326 = vadd.f32 0.0, %v1325
        %v1327 = vpop.f32.mrf.mxu0
        %v1328 = vadd.f32 0.0, %v1327
        %v1329 = vpop.f32.mrf.mxu0
        %v1330 = vpop.f32.mrf.mxu0
        %1331 = vdwg.mxu0
        %1332 = vmatprep.subr.bf16.mxu0 %v593
        %1333 = vmatpush1.bf16.msra.mxu0 %v592
        %1334 = vmatprep.subr.bf16.mxu0 %v589
        %1335 = vmatpush1.bf16.msra.mxu0 %v588
        %1336 = vmatprep.subr.bf16.mxu0 %v585
        %1337 = vmatpush1.bf16.msra.mxu0 %v584
        %1338 = vmatprep.subr.bf16.mxu0 %v581
        %1339 = vmatpush1.bf16.msra.mxu0 %v580
        %1340 = vmatprep.subr.bf16.mxu0 %v577
        %1341 = vmatpush1.bf16.msra.mxu0 %v576
        %1342 = vmatprep.subr.bf16.mxu0 %v573
        %1343 = vmatpush1.bf16.msra.mxu0 %v572
        %1344 = vmatprep.subr.bf16.mxu0 %v569
        %1345 = vmatpush1.bf16.msra.mxu0 %v568
        %1346 = vmatprep.subr.bf16.mxu0 %v565
        %1347 = vmatpush1.bf16.msra.mxu0 %v564
        %1348 = vmatprep.subr.bf16.mxu0 0
        %1349 = vmatpush2.bf16.msra.mxu0 0
        %1350 = vmatprep.subr.bf16.mxu0 0
        %1351 = vmatpush2.bf16.msra.mxu0 0
        %1352 = vmatprep.subr.bf16.mxu0 0
        %1353 = vmatpush2.bf16.msra.mxu0 0
        %1354 = vmatprep.subr.bf16.mxu0 0
        %1355 = vmatpush2.bf16.msra.mxu0 0
        %1356 = vmatprep.subr.bf16.mxu0 0
        %1357 = vmatpush2.bf16.msra.mxu0 0
        %1358 = vmatprep.subr.bf16.mxu0 0
        %1359 = vmatpush2.bf16.msra.mxu0 0
        %1360 = vmatprep.subr.bf16.mxu0 0
        %1361 = vmatpush2.bf16.msra.mxu0 0
        %1362 = vmatprep.subr.bf16.mxu0 0
        %1363 = vmatpush2.bf16.msra.mxu0 0
        %1364 = vmatprep.mubr.bf16.mxu0 0
        %1365 = vmatmul.mubr.bf16.gmra.mxu0 %v1290
        %v1366 = vpop.f32.mrf.mxu0
        %v1367 = vadd.f32 0.0, %v1366
        %v1368 = vpop.f32.mrf.mxu0
        %v1369 = vadd.f32 0.0, %v1368
        %v1370 = vpop.f32.mrf.mxu0
        %v1371 = vpop.f32.mrf.mxu0
        %1372 = vdwg.mxu0
        %v1373 = vadd.f32 %v1286, %v1326
        %v1374 = vadd.f32 %v1287, %v1328
        %v1375 = vadd.f32 %v1288, %v1367
        %v1376 = vadd.f32 %v1289, %v1369
        %v1377 = vxor.u32 %v1373, 2147483648
        %v1378 = vmul.f32 %v1377, 1.442695
        %v1379 = vpow.pop %v1378
        %v1380 = vadd.f32 %v1379, 1.0
        %v1381 = vrcp.pop %v1380
        %v1382 = vmul.f32 1.0, %v1381
        %v1383 = vxor.u32 %v1374, 2147483648
        %v1384 = vmul.f32 %v1383, 1.442695
        %v1385 = vpow.pop %v1384
        %v1386 = vadd.f32 %v1385, 1.0
        %v1387 = vrcp.pop %v1386
        %v1388 = vmul.f32 1.0, %v1387
        %v1389 = vtanh.pop %v1375
        %v1390 = vxor.u32 %v1376, 2147483648
        %v1391 = vmul.f32 %v1390, 1.442695
        %v1392 = vpow.pop %v1391
        %v1393 = vadd.f32 %v1392, 1.0
        %v1394 = vrcp.pop %v1393
        %v1395 = vmul.f32 1.0, %v1394
        %v1396 = vmul.f32 %v1388, %v1280
        %v1397 = vmul.f32 %v1382, %v1389
        %v1398 = vadd.f32 %v1396, %v1397
        %v1399 = vtanh.pop %v1398
        %v1400 = vmul.f32 %v1395, %v1399
        %v1401 = vstv %s1282
        %vm1402 = vcmp.lt.s32.totalorder %v1401, %v452
        %v1403 = vsel %vm1402, 1, 0
        %1404 = vset.pattern.permute.xlu0 0
        %1405 = vperm.xlu0 %1404, %v1403
        %v1406 = vpop.permute.xlu0 %1405
        %vm1407 = vcmp.eq.s32.totalorder %v1406, 1
        %v1408 = vsel %vm1407, %v1400, 0.0
        %s1409 = smul.u32 %s1281, 8
        %s1410 = scalar_lea.vmem %s392, %s1409 [#allocation6]
        %1411 = vst [vmem:[%s1410] sm:$0xff] %v1408
        %v1412 = vsel %vm1407, %v1400, %v1279
        %v1413 = vsel %vm1407, %v1398, %v1280
        %s1414 = scalar_select %p455, 6, 1
        %s1415 = sadd.s32 %s419, %s1414
        %s1416 = smul.u32 %s1414, 4
        %s1417 = smul.addr %s1416, 8
        %s1418 = scalar_lea.vmem %s362, %s1417 [#allocation4]
        %v1419 = vld [vmem:[%s1418] sm:$0xff]
        %v1420 = vld [vmem:[%s1418 + $0x8] sm:$0xff]
        %v1421 = vld [vmem:[%s1418 + $0x10] sm:$0xff]
        %v1422 = vld [vmem:[%s1418 + $0x18] sm:$0xff]
        %v1423 = vpack.c.bf16 %v1412, %v1412
        %1424 = vmatprep.subr.bf16.mxu0 %v591
        %1425 = vmatpush1.bf16.msra.mxu0 %v590
        %1426 = vmatprep.subr.bf16.mxu0 %v587
        %1427 = vmatpush1.bf16.msra.mxu0 %v586
        %1428 = vmatprep.subr.bf16.mxu0 %v583
        %1429 = vmatpush1.bf16.msra.mxu0 %v582
        %1430 = vmatprep.subr.bf16.mxu0 %v579
        %1431 = vmatpush1.bf16.msra.mxu0 %v578
        %1432 = vmatprep.subr.bf16.mxu0 %v575
        %1433 = vmatpush1.bf16.msra.mxu0 %v574
        %1434 = vmatprep.subr.bf16.mxu0 %v571
        %1435 = vmatpush1.bf16.msra.mxu0 %v570
        %1436 = vmatprep.subr.bf16.mxu0 %v567
        %1437 = vmatpush1.bf16.msra.mxu0 %v566
        %1438 = vmatprep.subr.bf16.mxu0 %v563
        %1439 = vmatpush1.bf16.msra.mxu0 %v562
        %1440 = vmatprep.subr.bf16.mxu0 0
        %1441 = vmatpush2.bf16.msra.mxu0 0
        %1442 = vmatprep.subr.bf16.mxu0 0
        %1443 = vmatpush2.bf16.msra.mxu0 0
        %1444 = vmatprep.subr.bf16.mxu0 0
        %1445 = vmatpush2.bf16.msra.mxu0 0
        %1446 = vmatprep.subr.bf16.mxu0 0
        %1447 = vmatpush2.bf16.msra.mxu0 0
        %1448 = vmatprep.subr.bf16.mxu0 0
        %1449 = vmatpush2.bf16.msra.mxu0 0
        %1450 = vmatprep.subr.bf16.mxu0 0
        %1451 = vmatpush2.bf16.msra.mxu0 0
        %1452 = vmatprep.subr.bf16.mxu0 0
        %1453 = vmatpush2.bf16.msra.mxu0 0
        %1454 = vmatprep.subr.bf16.mxu0 0
        %1455 = vmatpush2.bf16.msra.mxu0 0
        %1456 = vmatprep.mubr.bf16.mxu0 0
        %1457 = vmatmul.mubr.bf16.gmra.mxu0 %v1423
        %v1458 = vpop.f32.mrf.mxu0
        %v1459 = vadd.f32 0.0, %v1458
        %v1460 = vpop.f32.mrf.mxu0
        %v1461 = vadd.f32 0.0, %v1460
        %v1462 = vpop.f32.mrf.mxu0
        %v1463 = vpop.f32.mrf.mxu0
        %1464 = vdwg.mxu0
        %1465 = vmatprep.subr.bf16.mxu0 %v593
        %1466 = vmatpush1.bf16.msra.mxu0 %v592
        %1467 = vmatprep.subr.bf16.mxu0 %v589
        %1468 = vmatpush1.bf16.msra.mxu0 %v588
        %1469 = vmatprep.subr.bf16.mxu0 %v585
        %1470 = vmatpush1.bf16.msra.mxu0 %v584
        %1471 = vmatprep.subr.bf16.mxu0 %v581
        %1472 = vmatpush1.bf16.msra.mxu0 %v580
        %1473 = vmatprep.subr.bf16.mxu0 %v577
        %1474 = vmatpush1.bf16.msra.mxu0 %v576
        %1475 = vmatprep.subr.bf16.mxu0 %v573
        %1476 = vmatpush1.bf16.msra.mxu0 %v572
        %1477 = vmatprep.subr.bf16.mxu0 %v569
        %1478 = vmatpush1.bf16.msra.mxu0 %v568
        %1479 = vmatprep.subr.bf16.mxu0 %v565
        %1480 = vmatpush1.bf16.msra.mxu0 %v564
        %1481 = vmatprep.subr.bf16.mxu0 0
        %1482 = vmatpush2.bf16.msra.mxu0 0
        %1483 = vmatprep.subr.bf16.mxu0 0
        %1484 = vmatpush2.bf16.msra.mxu0 0
        %1485 = vmatprep.subr.bf16.mxu0 0
        %1486 = vmatpush2.bf16.msra.mxu0 0
        %1487 = vmatprep.subr.bf16.mxu0 0
        %1488 = vmatpush2.bf16.msra.mxu0 0
        %1489 = vmatprep.subr.bf16.mxu0 0
        %1490 = vmatpush2.bf16.msra.mxu0 0
        %1491 = vmatprep.subr.bf16.mxu0 0
        %1492 = vmatpush2.bf16.msra.mxu0 0
        %1493 = vmatprep.subr.bf16.mxu0 0
        %1494 = vmatpush2.bf16.msra.mxu0 0
        %1495 = vmatprep.subr.bf16.mxu0 0
        %1496 = vmatpush2.bf16.msra.mxu0 0
        %1497 = vmatprep.mubr.bf16.mxu0 0
        %1498 = vmatmul.mubr.bf16.gmra.mxu0 %v1423
        %v1499 = vpop.f32.mrf.mxu0
        %v1500 = vadd.f32 0.0, %v1499
        %v1501 = vpop.f32.mrf.mxu0
        %v1502 = vadd.f32 0.0, %v1501
        %v1503 = vpop.f32.mrf.mxu0
        %v1504 = vpop.f32.mrf.mxu0
        %1505 = vdwg.mxu0
        %v1506 = vadd.f32 %v1419, %v1459
        %v1507 = vadd.f32 %v1420, %v1461
        %v1508 = vadd.f32 %v1421, %v1500
        %v1509 = vadd.f32 %v1422, %v1502
        %v1510 = vxor.u32 %v1506, 2147483648
        %v1511 = vmul.f32 %v1510, 1.442695
        %v1512 = vpow.pop %v1511
        %v1513 = vadd.f32 %v1512, 1.0
        %v1514 = vrcp.pop %v1513
        %v1515 = vmul.f32 1.0, %v1514
        %v1516 = vxor.u32 %v1507, 2147483648
        %v1517 = vmul.f32 %v1516, 1.442695
        %v1518 = vpow.pop %v1517
        %v1519 = vadd.f32 %v1518, 1.0
        %v1520 = vrcp.pop %v1519
        %v1521 = vmul.f32 1.0, %v1520
        %v1522 = vtanh.pop %v1508
        %v1523 = vxor.u32 %v1509, 2147483648
        %v1524 = vmul.f32 %v1523, 1.442695
        %v1525 = vpow.pop %v1524
        %v1526 = vadd.f32 %v1525, 1.0
        %v1527 = vrcp.pop %v1526
        %v1528 = vmul.f32 1.0, %v1527
        %v1529 = vmul.f32 %v1521, %v1413
        %v1530 = vmul.f32 %v1515, %v1522
        %v1531 = vadd.f32 %v1529, %v1530
        %v1532 = vtanh.pop %v1531
        %v1533 = vmul.f32 %v1528, %v1532
        %v1534 = vstv %s1415
        %vm1535 = vcmp.lt.s32.totalorder %v1534, %v452
        %v1536 = vsel %vm1535, 1, 0
        %1537 = vset.pattern.permute.xlu0 0
        %1538 = vperm.xlu0 %1537, %v1536
        %v1539 = vpop.permute.xlu0 %1538
        %vm1540 = vcmp.eq.s32.totalorder %v1539, 1
        %v1541 = vsel %vm1540, %v1533, 0.0
        %s1542 = smul.u32 %s1414, 8
        %s1543 = scalar_lea.vmem %s392, %s1542 [#allocation6]
        %1544 = vst [vmem:[%s1543] sm:$0xff] %v1541
        %v1545 = vsel %vm1540, %v1533, %v1412
        %v1546 = vsel %vm1540, %v1531, %v1413
        %s1547 = scalar_select %p455, 7, 0
        %s1548 = sadd.s32 %s419, %s1547
        %s1549 = smul.u32 %s1547, 4
        %s1550 = smul.addr %s1549, 8
        %s1551 = scalar_lea.vmem %s362, %s1550 [#allocation4]
        %v1552 = vld [vmem:[%s1551] sm:$0xff]
        %v1553 = vld [vmem:[%s1551 + $0x8] sm:$0xff]
        %v1554 = vld [vmem:[%s1551 + $0x10] sm:$0xff]
        %v1555 = vld [vmem:[%s1551 + $0x18] sm:$0xff]
        %v1556 = vpack.c.bf16 %v1545, %v1545
        %1557 = vmatprep.subr.bf16.mxu0 %v591
        %1558 = vmatpush1.bf16.msra.mxu0 %v590
        %1559 = vmatprep.subr.bf16.mxu0 %v587
        %1560 = vmatpush1.bf16.msra.mxu0 %v586
        %1561 = vmatprep.subr.bf16.mxu0 %v583
        %1562 = vmatpush1.bf16.msra.mxu0 %v582
        %1563 = vmatprep.subr.bf16.mxu0 %v579
        %1564 = vmatpush1.bf16.msra.mxu0 %v578
        %1565 = vmatprep.subr.bf16.mxu0 %v575
        %1566 = vmatpush1.bf16.msra.mxu0 %v574
        %1567 = vmatprep.subr.bf16.mxu0 %v571
        %1568 = vmatpush1.bf16.msra.mxu0 %v570
        %1569 = vmatprep.subr.bf16.mxu0 %v567
        %1570 = vmatpush1.bf16.msra.mxu0 %v566
        %1571 = vmatprep.subr.bf16.mxu0 %v563
        %1572 = vmatpush1.bf16.msra.mxu0 %v562
        %1573 = vmatprep.subr.bf16.mxu0 0
        %1574 = vmatpush2.bf16.msra.mxu0 0
        %1575 = vmatprep.subr.bf16.mxu0 0
        %1576 = vmatpush2.bf16.msra.mxu0 0
        %1577 = vmatprep.subr.bf16.mxu0 0
        %1578 = vmatpush2.bf16.msra.mxu0 0
        %1579 = vmatprep.subr.bf16.mxu0 0
        %1580 = vmatpush2.bf16.msra.mxu0 0
        %1581 = vmatprep.subr.bf16.mxu0 0
        %1582 = vmatpush2.bf16.msra.mxu0 0
        %1583 = vmatprep.subr.bf16.mxu0 0
        %1584 = vmatpush2.bf16.msra.mxu0 0
        %1585 = vmatprep.subr.bf16.mxu0 0
        %1586 = vmatpush2.bf16.msra.mxu0 0
        %1587 = vmatprep.subr.bf16.mxu0 0
        %1588 = vmatpush2.bf16.msra.mxu0 0
        %1589 = vmatprep.mubr.bf16.mxu0 0
        %1590 = vmatmul.mubr.bf16.gmra.mxu0 %v1556
        %v1591 = vpop.f32.mrf.mxu0
        %v1592 = vadd.f32 0.0, %v1591
        %v1593 = vpop.f32.mrf.mxu0
        %v1594 = vadd.f32 0.0, %v1593
        %v1595 = vpop.f32.mrf.mxu0
        %v1596 = vpop.f32.mrf.mxu0
        %1597 = vdwg.mxu0
        %1598 = vmatprep.subr.bf16.mxu0 %v593
        %1599 = vmatpush1.bf16.msra.mxu0 %v592
        %1600 = vmatprep.subr.bf16.mxu0 %v589
        %1601 = vmatpush1.bf16.msra.mxu0 %v588
        %1602 = vmatprep.subr.bf16.mxu0 %v585
        %1603 = vmatpush1.bf16.msra.mxu0 %v584
        %1604 = vmatprep.subr.bf16.mxu0 %v581
        %1605 = vmatpush1.bf16.msra.mxu0 %v580
        %1606 = vmatprep.subr.bf16.mxu0 %v577
        %1607 = vmatpush1.bf16.msra.mxu0 %v576
        %1608 = vmatprep.subr.bf16.mxu0 %v573
        %1609 = vmatpush1.bf16.msra.mxu0 %v572
        %1610 = vmatprep.subr.bf16.mxu0 %v569
        %1611 = vmatpush1.bf16.msra.mxu0 %v568
        %1612 = vmatprep.subr.bf16.mxu0 %v565
        %1613 = vmatpush1.bf16.msra.mxu0 %v564
        %1614 = vmatprep.subr.bf16.mxu0 0
        %1615 = vmatpush2.bf16.msra.mxu0 0
        %1616 = vmatprep.subr.bf16.mxu0 0
        %1617 = vmatpush2.bf16.msra.mxu0 0
        %1618 = vmatprep.subr.bf16.mxu0 0
        %1619 = vmatpush2.bf16.msra.mxu0 0
        %1620 = vmatprep.subr.bf16.mxu0 0
        %1621 = vmatpush2.bf16.msra.mxu0 0
        %1622 = vmatprep.subr.bf16.mxu0 0
        %1623 = vmatpush2.bf16.msra.mxu0 0
        %1624 = vmatprep.subr.bf16.mxu0 0
        %1625 = vmatpush2.bf16.msra.mxu0 0
        %1626 = vmatprep.subr.bf16.mxu0 0
        %1627 = vmatpush2.bf16.msra.mxu0 0
        %1628 = vmatprep.subr.bf16.mxu0 0
        %1629 = vmatpush2.bf16.msra.mxu0 0
        %1630 = vmatprep.mubr.bf16.mxu0 0
        %1631 = vmatmul.mubr.bf16.gmra.mxu0 %v1556
        %v1632 = vpop.f32.mrf.mxu0
        %v1633 = vadd.f32 0.0, %v1632
        %v1634 = vpop.f32.mrf.mxu0
        %v1635 = vadd.f32 0.0, %v1634
        %v1636 = vpop.f32.mrf.mxu0
        %v1637 = vpop.f32.mrf.mxu0
        %1638 = vdwg.mxu0
        %v1639 = vadd.f32 %v1552, %v1592
        %v1640 = vadd.f32 %v1553, %v1594
        %v1641 = vadd.f32 %v1554, %v1633
        %v1642 = vadd.f32 %v1555, %v1635
        %v1643 = vxor.u32 %v1639, 2147483648
        %v1644 = vmul.f32 %v1643, 1.442695
        %v1645 = vpow.pop %v1644
        %v1646 = vadd.f32 %v1645, 1.0
        %v1647 = vrcp.pop %v1646
        %v1648 = vmul.f32 1.0, %v1647
        %v1649 = vxor.u32 %v1640, 2147483648
        %v1650 = vmul.f32 %v1649, 1.442695
        %v1651 = vpow.pop %v1650
        %v1652 = vadd.f32 %v1651, 1.0
        %v1653 = vrcp.pop %v1652
        %v1654 = vmul.f32 1.0, %v1653
        %v1655 = vtanh.pop %v1641
        %v1656 = vxor.u32 %v1642, 2147483648
        %v1657 = vmul.f32 %v1656, 1.442695
        %v1658 = vpow.pop %v1657
        %v1659 = vadd.f32 %v1658, 1.0
        %v1660 = vrcp.pop %v1659
        %v1661 = vmul.f32 1.0, %v1660
        %v1662 = vmul.f32 %v1654, %v1546
        %v1663 = vmul.f32 %v1648, %v1655
        %v1664 = vadd.f32 %v1662, %v1663
        %v1665 = vtanh.pop %v1664
        %v1666 = vmul.f32 %v1661, %v1665
        %v1667 = vstv %s1548
        %vm1668 = vcmp.lt.s32.totalorder %v1667, %v452
        %v1669 = vsel %vm1668, 1, 0
        %1670 = vset.pattern.permute.xlu0 0
        %1671 = vperm.xlu0 %1670, %v1669
        %v1672 = vpop.permute.xlu0 %1671
        %vm1673 = vcmp.eq.s32.totalorder %v1672, 1
        %v1674 = vsel %vm1673, %v1666, 0.0
        %s1675 = smul.u32 %s1547, 8
        %s1676 = scalar_lea.vmem %s392, %s1675 [#allocation6]
        %1677 = vst [vmem:[%s1676] sm:$0xff] %v1674
        %v1678 = vsel %vm1673, %v1666, %v1545
        %v1679 = vsel %vm1673, %v1664, %v1546
        %1680 = vst [vmem:[#allocation2] sm:$0xff] %v1678
        %1681 = vst [vmem:[#allocation3] sm:$0xff] %v1679
        %s1682 = sand.u32 %s131, 1
        %s1683 = sand.u32 %s131, 1
        %s1684 = smul.addr %s1683, 64
        %s1685 = scalar_lea.vmem [#allocation6], %s1684
        // Predicated region
        $region83: #{mt_lstm_forward.2} parent=69 // pred_check
          %p1686 = pneg %p141
        $region84: #{mt_lstm_forward.2} parent=69 // pred_check_branch
          %1688 = sbr.rel (%p1686) target = $region86
        $region85: #{mt_lstm_forward.2} parent=69 // pred_region
          %s1689 = ssub.s32 1, %s18
          %s1690 = smul.u32 %s1689, %s19
          %s1691 = ssub.s32 0, %s19
          %s1692 = smul.u32 %s18, %s1691
          %s1693 = sadd.s32 %s1690, %s1692
          %s1694 = smul.u32 8, %s1693
          %s1695 = smul.addr %s1694, 2
          %s1696 = sadd.s32 %s18, %s1695
          %s1697 = smul.addr %s1696, 8
          %s1698 = scalar_lea.vmem %s3, %s1697
          // Predicated region
          $region87: #{mt_lstm_forward.2} parent=85 // pred_check
            _
          $region88: #{mt_lstm_forward.2} parent=85 // pred_check_branch
            %1700 = sbr.rel (0) target = $region90
          $region89: #{mt_lstm_forward.2} parent=85 // pred_region
            // Predicated region
            $region91: #{mt_lstm_forward.2} parent=89 // pred_check
              _
            $region92: #{mt_lstm_forward.2} parent=89 // pred_check_branch
              %1702 = sbr.rel (0) target = $region94
            $region93: #{mt_lstm_forward.2} parent=89 // pred_region
              // Predicated region
              $region106: #{mt_lstm_forward.2} parent=93 // pred_check
                _
              $region107: #{mt_lstm_forward.2} parent=93 // pred_check_branch
                %1732 = sbr.rel (0) target = $region109
              $region108: #{mt_lstm_forward.2} parent=93 // pred_region
                loop: start=0, step=1, limit=1
                $region110: #{mt_lstm_forward.2} parent=108 // loop_pre_header
                  _
                $region111: #{mt_lstm_forward.2} parent=108 // loop_header
                  %s1734 = sphi 0, %s1738
                  %p1735 = scmp.ge.s32.totalorder %s1734, 1
                  %s1739 = sphi %s1685, %s1685
                  %s1740 = sphi %s1698, %s1698
                $region112: #{mt_lstm_forward.2} parent=108 // loop_header_branch
                  %1737 = sbr.rel (%p1735) target = $region116
                $region113: #{mt_lstm_forward.2} parent=108 // loop_body
                  %v1741 = vld [vmem:[%s1739] sm:$0xff]
                  %1742 = vst [vmem:[%s1740] sm:$0xff] %v1741
                  %v1743 = vld [vmem:[%s1739 + $0x8] sm:$0xff]
                  %1744 = vst [vmem:[%s1740 + $0x10] sm:$0xff] %v1743
                  %v1745 = vld [vmem:[%s1739 + $0x10] sm:$0xff]
                  %1746 = vst [vmem:[%s1740 + $0x20] sm:$0xff] %v1745
                  %v1747 = vld [vmem:[%s1739 + $0x18] sm:$0xff]
                  %1748 = vst [vmem:[%s1740 + $0x30] sm:$0xff] %v1747
                  %v1749 = vld [vmem:[%s1739 + $0x20] sm:$0xff]
                  %1750 = vst [vmem:[%s1740 + $0x40] sm:$0xff] %v1749
                  %v1751 = vld [vmem:[%s1739 + $0x28] sm:$0xff]
                  %1752 = vst [vmem:[%s1740 + $0x50] sm:$0xff] %v1751
                  %v1753 = vld [vmem:[%s1739 + $0x30] sm:$0xff]
                  %1754 = vst [vmem:[%s1740 + $0x60] sm:$0xff] %v1753
                  %v1755 = vld [vmem:[%s1739 + $0x38] sm:$0xff]
                  %1756 = vst [vmem:[%s1740 + $0x70] sm:$0xff] %v1755
                $region114: #{mt_lstm_forward.2} parent=108 // loop_footer
                  %s1738 = sadd.s32 1, %s1734
                $region115: #{mt_lstm_forward.2} parent=108 // loop_footer_branch
                  %1733 = sbr.rel target = $region111
                $region116: #{mt_lstm_forward.2} parent=108 // loop_exit
                  _
              $region109: #{mt_lstm_forward.2} parent=93 // pred_fallthru
                _
              // Predicated region
              $region117: #{mt_lstm_forward.2} parent=93 // pred_check
                _
              $region118: #{mt_lstm_forward.2} parent=93 // pred_check_branch
                %1758 = sbr.rel target = $region120
              $region119: #{mt_lstm_forward.2} parent=93 // pred_region
                _
              $region120: #{mt_lstm_forward.2} parent=93 // pred_fallthru
                _
            $region94: #{mt_lstm_forward.2} parent=89 // pred_fallthru
              _
            // Predicated region
            $region95: #{mt_lstm_forward.2} parent=89 // pred_check
              _
            $region96: #{mt_lstm_forward.2} parent=89 // pred_check_branch
              %1704 = sbr.rel target = $region98
            $region97: #{mt_lstm_forward.2} parent=89 // pred_region
              %s1706 = ssub.s32 256, 1
              loop: start=0, step=1, limit=1
              $region99: #{mt_lstm_forward.2} parent=97 // loop_pre_header
                _
              $region100: #{mt_lstm_forward.2} parent=97 // loop_header
                %s1708 = sphi 0, %s1712
                %p1709 = scmp.ge.s32.totalorder %s1708, 1
                %s1713 = sphi %s1685, %s1685
                %s1714 = sphi %s1698, %s1698
              $region101: #{mt_lstm_forward.2} parent=97 // loop_header_branch
                %1711 = sbr.rel (%p1709) target = $region105
              $region102: #{mt_lstm_forward.2} parent=97 // loop_body
                %v1715 = vld [vmem:[%s1713] sm:%s1706]
                %1716 = vst [vmem:[%s1714] sm:%s1706] %v1715
                %v1717 = vld [vmem:[%s1713 + $0x8] sm:%s1706]
                %1718 = vst [vmem:[%s1714 + $0x10] sm:%s1706] %v1717
                %v1719 = vld [vmem:[%s1713 + $0x10] sm:%s1706]
                %1720 = vst [vmem:[%s1714 + $0x20] sm:%s1706] %v1719
                %v1721 = vld [vmem:[%s1713 + $0x18] sm:%s1706]
                %1722 = vst [vmem:[%s1714 + $0x30] sm:%s1706] %v1721
                %v1723 = vld [vmem:[%s1713 + $0x20] sm:%s1706]
                %1724 = vst [vmem:[%s1714 + $0x40] sm:%s1706] %v1723
                %v1725 = vld [vmem:[%s1713 + $0x28] sm:%s1706]
                %1726 = vst [vmem:[%s1714 + $0x50] sm:%s1706] %v1725
                %v1727 = vld [vmem:[%s1713 + $0x30] sm:%s1706]
                %1728 = vst [vmem:[%s1714 + $0x60] sm:%s1706] %v1727
                %v1729 = vld [vmem:[%s1713 + $0x38] sm:%s1706]
                %1730 = vst [vmem:[%s1714 + $0x70] sm:%s1706] %v1729
              $region103: #{mt_lstm_forward.2} parent=97 // loop_footer
                %s1712 = sadd.s32 1, %s1708
              $region104: #{mt_lstm_forward.2} parent=97 // loop_footer_branch
                %1707 = sbr.rel target = $region100
              $region105: #{mt_lstm_forward.2} parent=97 // loop_exit
                _
            $region98: #{mt_lstm_forward.2} parent=89 // pred_fallthru
              _
          $region90: #{mt_lstm_forward.2} parent=85 // pred_fallthru
            _
          %1759 = vnop
        $region86: #{mt_lstm_forward.2} parent=69 // pred_fallthru
          _
      $region70: #{mt_lstm_forward.2} parent=5 // pred_fallthru
        _
      %p1760 = scmp.le.s32.totalorder 2, %s9
      // Predicated region
      $region121: #{mt_lstm_forward.2} parent=5 // pred_check
        %p1761 = pneg %p1760
      $region122: #{mt_lstm_forward.2} parent=5 // pred_check_branch
        %1763 = sbr.rel (%p1761) target = $region124
      $region123: #{mt_lstm_forward.2} parent=5 // pred_region
        %s1764 = ssub.s32 %s9, 2
        // Predicated region
        $region125: #{mt_lstm_forward.2} parent=123 // pred_check
          %p1765 = pneg %p147
        $region126: #{mt_lstm_forward.2} parent=123 // pred_check_branch
          %1767 = sbr.rel (%p1765) target = $region128
        $region127: #{mt_lstm_forward.2} parent=123 // pred_region
          %s1768 = sand.u32 %s132, 1
          %s1769 = sand.u32 %s132, 1
          %s1770 = smul.addr %s1769, 64
          %s1771 = scalar_lea.vmem [#allocation6], %s1770
        $region128: #{mt_lstm_forward.2} parent=123 // pred_fallthru
          _
      $region124: #{mt_lstm_forward.2} parent=5 // pred_fallthru
        _
    $region6: #{mt_lstm_forward.2} parent=1 // loop_footer
      %s13 = sadd.s32 1, %s9
    $region7: #{mt_lstm_forward.2} parent=1 // loop_footer_branch
      %8 = sbr.rel target = $region3
    $region8: #{mt_lstm_forward.2} parent=1 // loop_exit
      _

</llo_original>
